<compile_context>
chip_gen: v7x
topology: tpu7x:2x2x1
jax: 0.10.0
libtpu: 0.0.40
codegen_flags: <defaults>
</compile_context>

<pallas_src>
import jax
import jax.numpy as jnp
from jax import lax
from jax.experimental import pallas as pl
from jax.experimental.pallas import tpu as pltpu


def _fused_attn_kernel(x_ref, wqkv_ref, wuT_ref, bu_ref, o_ref, concat_ref):
    """One grid step processes BB batches.

    x_ref:     (BB, T, K)  bf16
    wqkv_ref:  (K, 3*H*K)  bf16   (1/sqrt(K) folded into the Wq columns)
    wuT_ref:   (K, H*K)    bf16   (unifyheads weight, pre-transposed, lane-dense)
    bu_ref:    (1, K)      f32
    o_ref:     (BB, T, K)  f32
    concat_ref:(BB*T, H*K) f32 VMEM scratch for the per-head outputs.
    """
    BB, T, K = x_ref.shape
    HK = wuT_ref.shape[1]
    H = HK // K

    # Single lane-dense QKV projection: (BB*T, K) @ (K, 3*H*K) -> f32.
    x = x_ref[...].reshape(BB * T, K)
    qkv = jnp.dot(x, wqkv_ref[...], preferred_element_type=jnp.float32)
    q_all = qkv[:, :HK]            # softmax scale already folded into Wq
    k_all = qkv[:, HK:2 * HK]
    v_all = qkv[:, 2 * HK:]

    # Causal additive bias, hoisted out of the head loop (finite -> NaN-safe).
    row = lax.broadcasted_iota(jnp.int32, (T, T), 0)
    col = lax.broadcasted_iota(jnp.int32, (T, T), 1)
    mask_bias = jnp.where(col > row, -1e30, 0.0).astype(jnp.float32)

    # Short static loops (BB, H small); per-head tiles stay in vregs.
    for bb in range(BB):
        r = slice(bb * T, (bb + 1) * T)
        for h in range(H):
            c = slice(h * K, (h + 1) * K)
            qh = q_all[r, c].astype(jnp.bfloat16)
            kh = k_all[r, c].astype(jnp.bfloat16)
            vh = v_all[r, c].astype(jnp.bfloat16)

            # q @ k^T without materializing a transpose (contract dim 1 with dim 1).
            scores = lax.dot_general(
                qh, kh, (((1,), (1,)), ((), ())),
                preferred_element_type=jnp.float32) + mask_bias

            # Softmax over the key axis, all in f32.
            m = jnp.max(scores, axis=-1, keepdims=True)
            p = jnp.exp(scores - m)
            denom = jnp.sum(p, axis=-1, keepdims=True)
            probs = p * pl.reciprocal(denom, approx=False)

            head_out = jnp.dot(probs.astype(jnp.bfloat16), vh,
                               preferred_element_type=jnp.float32)
            concat_ref[r, c] = head_out

    # One lane-dense unifyheads matmul: (BB*T, H*K) contracted with (K, H*K) on HK.
    out = lax.dot_general(
        concat_ref[...].astype(jnp.bfloat16), wuT_ref[...],
        (((1,), (1,)), ((), ())),
        preferred_element_type=jnp.float32) + bu_ref[...]
    o_ref[...] = out.reshape(BB, T, K)


def _batches_per_step(batch):
    """Batch block size per grid step.

    Single-TC chips (v5e, v6e): fold the whole batch into one grid step (saves
    ~0.35us/step and doubles matmul M).  v7x / other megacore parts: keep one batch
    per step so the "parallel" grid axis shards batches across TensorCores.
    """
    try:
        kind = jax.devices()[0].device_kind.lower()
    except Exception:
        return 1
    single_tc = ("v5e" in kind) or ("v5 lite" in kind) or ("v6" in kind)
    return batch if single_tc else 1


def self_attention_masked(x, wq, wk, wv, wu, bu, heads):
    """x: (b, t, k).  wq/wk/wv: (k, heads*k) used as y = x @ W.
    wu: (heads*k, k), bu: (k,).  Returns (b, t, k) in float32."""
    B, T, K = x.shape
    H = heads
    HK = H * K

    inv_sqrt_k = 1.0 / (float(K) ** 0.5)   # == k**-0.25 applied to both q and k
    # Fused QKV weight with the softmax scale folded into the Wq columns; bf16 MXU
    # operands halve weight DMA bytes and use the single-pass bf16 MXU path.
    wqkv = jnp.concatenate([wq * inv_sqrt_k, wk, wv], axis=1).astype(jnp.bfloat16)
    wuT = wu.T.astype(jnp.bfloat16)                 # (K, H*K) lane-dense
    xb = x.astype(jnp.bfloat16)
    bias = bu.reshape(1, K).astype(jnp.float32)

    BB = _batches_per_step(B)
    grid = (B // BB,)

    return pl.pallas_call(
        _fused_attn_kernel,
        out_shape=jax.ShapeDtypeStruct((B, T, K), jnp.float32),
        grid=grid,
        in_specs=[
            pl.BlockSpec((BB, T, K), lambda b: (b, 0, 0)),   # x (BB batches per step)
            pl.BlockSpec((K, 3 * HK), lambda b: (0, 0)),     # fused Wqkv
            pl.BlockSpec((K, HK), lambda b: (0, 0)),         # Wu^T (lane-dense)
            pl.BlockSpec((1, K), lambda b: (0, 0)),          # bias
        ],
        out_specs=pl.BlockSpec((BB, T, K), lambda b: (b, 0, 0)),
        scratch_shapes=[pltpu.VMEM((BB * T, HK), jnp.float32)],
        compiler_params=pltpu.CompilerParams(
            dimension_semantics=("parallel",)),
    )(xb, wqkv, wuT, bias)


def _reference(x, wq, wk, wv, wu, bu, heads):
    """Pure-JAX (f32) re-statement of the PyTorch forward, for validation."""
    B, T, K = x.shape
    H = heads
    scale = float(K) ** 0.25
    q = (x @ wq).reshape(B, T, H, K).transpose(0, 2, 1, 3) / scale
    k_ = (x @ wk).reshape(B, T, H, K).transpose(0, 2, 1, 3) / scale
    v = (x @ wv).reshape(B, T, H, K).transpose(0, 2, 1, 3)
    dot = jnp.einsum("bhqd,bhkd->bhqk", q, k_)
    mask = jnp.triu(jnp.ones((T, T), dtype=bool), k=1)
    dot = jnp.where(mask[None, None], -jnp.inf, dot)
    dot = jax.nn.softmax(dot, axis=-1)
    out = jnp.einsum("bhqk,bhkd->bhqd", dot, v)
    out = out.transpose(0, 2, 1, 3).reshape(B, T, H * K)
    return out @ wu + bu


if __name__ == "__main__":
    B, T, K, HEADS = 2, 8, 32, 8

    key = jax.random.PRNGKey(0)
    kx, kq, kk_, kv, ku, kb = jax.random.split(key, 6)

    x = jax.random.normal(kx, (B, T, K), dtype=jnp.float32)
    # nn.Linear(k, k*heads, bias=False) weights, stored input-major (y = x @ W)
    wq = jax.random.normal(kq, (K, HEADS * K), dtype=jnp.float32) * 0.02
    wk = jax.random.normal(kk_, (K, HEADS * K), dtype=jnp.float32) * 0.02
    wv = jax.random.normal(kv, (K, HEADS * K), dtype=jnp.float32) * 0.02
    # nn.Linear(heads*k, k) with bias
    wu = jax.random.normal(ku, (HEADS * K, K), dtype=jnp.float32) * 0.02
    bu = jax.random.normal(kb, (K,), dtype=jnp.float32) * 0.02

    out = self_attention_masked(x, wq, wk, wv, wu, bu, HEADS)
    out = jax.block_until_ready(out)

    ref = _reference(x, wq, wk, wv, wu, bu, HEADS)
    assert out.shape == (B, T, K)
    # bf16 MXU operands (f32 accumulate) dominate the error budget -> slightly
    # looser tolerance than the pure-f32 version.
    assert jnp.allclose(out, ref, atol=3e-3, rtol=3e-3), "mismatch vs reference"

    print("KERNEL_OK")
</pallas_src>

<mosaic_0001>
module attributes {stable_mosaic.version = 11 : i64} {
  func.func @_fused_attn_kernel(%arg0: i32, %arg1: memref<1x8x32xbf16, #tpu.memory_space<vmem>>, %arg2: memref<32x768xbf16, #tpu.memory_space<vmem>>, %arg3: memref<32x256xbf16, #tpu.memory_space<vmem>>, %arg4: memref<1x32xf32, #tpu.memory_space<vmem>>, %arg5: memref<1x8x32xf32, #tpu.memory_space<vmem>>, %arg6: memref<8x256xf32, #tpu.memory_space<vmem>>) attributes {dimension_semantics = [#tpu.dimension_semantics<parallel>], iteration_bounds = array<i64: 2>, scalar_prefetch = 0 : i64, scratch_operands = 1 : i64, tpu.core_type = #tpu.core_type<tc>, window_params = [{transform_indices = @transform_0, window_bounds = array<i64: 1, 8, 32>}, {pipeline_mode = #tpu.pipeline_mode<synchronous>, transform_indices = @transform_1, window_bounds = array<i64: 32, 768>}, {pipeline_mode = #tpu.pipeline_mode<synchronous>, transform_indices = @transform_2, window_bounds = array<i64: 32, 256>}, {pipeline_mode = #tpu.pipeline_mode<synchronous>, transform_indices = @transform_3, window_bounds = array<i64: 1, 32>}, {transform_indices = @transform_4, window_bounds = array<i64: 1, 8, 32>}]} {
    %c0 = arith.constant 0 : index
    %c0_0 = arith.constant 0 : index
    %c0_1 = arith.constant 0 : index
    %0 = vector.load %arg1[%c0, %c0_0, %c0_1] : memref<1x8x32xbf16, #tpu.memory_space<vmem>>, vector<1x8x32xbf16>
    %1 = vector.shape_cast %0 : vector<1x8x32xbf16> to vector<8x32xbf16>
    %c0_2 = arith.constant 0 : index
    %c0_3 = arith.constant 0 : index
    %2 = vector.load %arg2[%c0_2, %c0_3] : memref<32x768xbf16, #tpu.memory_space<vmem>>, vector<32x768xbf16>
    %cst = arith.constant dense<0.000000e+00> : vector<8x768xf32>
    %3 = tpu.matmul %1, %2, %cst {dimension_numbers = #tpu.dot_dimension_numbers<[1], [0], [0], [1], [0, 0, 1, 1], [], []>} : vector<8x32xbf16>, vector<32x768xbf16>, vector<8x768xf32> -> vector<8x768xf32>
    %4 = vector.extract_strided_slice %3 {offsets = [0, 0], sizes = [8, 256], strides = [1, 1]} : vector<8x768xf32> to vector<8x256xf32>
    %5 = vector.extract_strided_slice %3 {offsets = [0, 256], sizes = [8, 256], strides = [1, 1]} : vector<8x768xf32> to vector<8x256xf32>
    %6 = vector.extract_strided_slice %3 {offsets = [0, 512], sizes = [8, 256], strides = [1, 1]} : vector<8x768xf32> to vector<8x256xf32>
    %7 = tpu.iota {dimensions = array<i32: 0>} : vector<8x8xi32>
    %8 = tpu.iota {dimensions = array<i32: 1>} : vector<8x8xi32>
    %9 = arith.cmpi sgt, %8, %7 : vector<8x8xi32>
    %cst_4 = arith.constant -1.000000e+30 : f32
    %cst_5 = arith.constant 0.000000e+00 : f32
    %10 = vector.broadcast %cst_4 : f32 to vector<8x8xf32>
    %11 = vector.broadcast %cst_5 : f32 to vector<8x8xf32>
    %12 = arith.select %9, %10, %11 : vector<8x8xi1>, vector<8x8xf32>
    %13 = vector.extract_strided_slice %4 {offsets = [0, 0], sizes = [8, 32], strides = [1, 1]} : vector<8x256xf32> to vector<8x32xf32>
    %14 = arith.truncf %13 : vector<8x32xf32> to vector<8x32xbf16>
    %15 = vector.extract_strided_slice %5 {offsets = [0, 0], sizes = [8, 32], strides = [1, 1]} : vector<8x256xf32> to vector<8x32xf32>
    %16 = arith.truncf %15 : vector<8x32xf32> to vector<8x32xbf16>
    %17 = vector.extract_strided_slice %6 {offsets = [0, 0], sizes = [8, 32], strides = [1, 1]} : vector<8x256xf32> to vector<8x32xf32>
    %18 = arith.truncf %17 : vector<8x32xf32> to vector<8x32xbf16>
    %cst_6 = arith.constant dense<0.000000e+00> : vector<8x8xf32>
    %19 = tpu.matmul %14, %16, %cst_6 {dimension_numbers = #tpu.dot_dimension_numbers<[1], [1], [0], [0], [0, 0, 1, 0], [], []>} : vector<8x32xbf16>, vector<8x32xbf16>, vector<8x8xf32> -> vector<8x8xf32>
    %20 = arith.addf %19, %12 : vector<8x8xf32>
    %cst_7 = arith.constant dense<0xFF800000> : vector<8xf32>
    %21 = vector.multi_reduction <maximumf>, %20, %cst_7 [1] : vector<8x8xf32> to vector<8xf32>
    %22 = vector.shape_cast %21 : vector<8xf32> to vector<8x1xf32>
    %23 = vector.broadcast %22 : vector<8x1xf32> to vector<8x8xf32>
    %24 = arith.subf %20, %23 : vector<8x8xf32>
    %25 = math.exp %24 : vector<8x8xf32>
    %cst_8 = arith.constant dense<0.000000e+00> : vector<8xf32>
    %26 = vector.multi_reduction <add>, %25, %cst_8 [1] : vector<8x8xf32> to vector<8xf32>
    %27 = vector.shape_cast %26 : vector<8xf32> to vector<8x1xf32>
    %28 = tpu.reciprocal %27 : vector<8x1xf32> -> vector<8x1xf32>
    %29 = vector.broadcast %28 : vector<8x1xf32> to vector<8x8xf32>
    %30 = arith.mulf %25, %29 : vector<8x8xf32>
    %31 = arith.truncf %30 : vector<8x8xf32> to vector<8x8xbf16>
    %cst_9 = arith.constant dense<0.000000e+00> : vector<8x32xf32>
    %32 = tpu.matmul %31, %18, %cst_9 {dimension_numbers = #tpu.dot_dimension_numbers<[1], [0], [0], [1], [0, 0, 1, 1], [], []>} : vector<8x8xbf16>, vector<8x32xbf16>, vector<8x32xf32> -> vector<8x32xf32>
    %c0_10 = arith.constant 0 : index
    %c0_11 = arith.constant 0 : index
    %33 = vector.load %arg6[%c0_10, %c0_11] : memref<8x256xf32, #tpu.memory_space<vmem>>, vector<8x32xf32>
    tpu.vector_store %arg6[%c0_10, %c0_11], %32 {strides = array<i32>} : memref<8x256xf32, #tpu.memory_space<vmem>>, vector<8x32xf32>,
    %34 = vector.extract_strided_slice %4 {offsets = [0, 32], sizes = [8, 32], strides = [1, 1]} : vector<8x256xf32> to vector<8x32xf32>
    %35 = arith.truncf %34 : vector<8x32xf32> to vector<8x32xbf16>
    %36 = vector.extract_strided_slice %5 {offsets = [0, 32], sizes = [8, 32], strides = [1, 1]} : vector<8x256xf32> to vector<8x32xf32>
    %37 = arith.truncf %36 : vector<8x32xf32> to vector<8x32xbf16>
    %38 = vector.extract_strided_slice %6 {offsets = [0, 32], sizes = [8, 32], strides = [1, 1]} : vector<8x256xf32> to vector<8x32xf32>
    %39 = arith.truncf %38 : vector<8x32xf32> to vector<8x32xbf16>
    %cst_12 = arith.constant dense<0.000000e+00> : vector<8x8xf32>
    %40 = tpu.matmul %35, %37, %cst_12 {dimension_numbers = #tpu.dot_dimension_numbers<[1], [1], [0], [0], [0, 0, 1, 0], [], []>} : vector<8x32xbf16>, vector<8x32xbf16>, vector<8x8xf32> -> vector<8x8xf32>
    %41 = arith.addf %40, %12 : vector<8x8xf32>
    %cst_13 = arith.constant dense<0xFF800000> : vector<8xf32>
    %42 = vector.multi_reduction <maximumf>, %41, %cst_13 [1] : vector<8x8xf32> to vector<8xf32>
    %43 = vector.shape_cast %42 : vector<8xf32> to vector<8x1xf32>
    %44 = vector.broadcast %43 : vector<8x1xf32> to vector<8x8xf32>
    %45 = arith.subf %41, %44 : vector<8x8xf32>
    %46 = math.exp %45 : vector<8x8xf32>
    %cst_14 = arith.constant dense<0.000000e+00> : vector<8xf32>
    %47 = vector.multi_reduction <add>, %46, %cst_14 [1] : vector<8x8xf32> to vector<8xf32>
    %48 = vector.shape_cast %47 : vector<8xf32> to vector<8x1xf32>
    %49 = tpu.reciprocal %48 : vector<8x1xf32> -> vector<8x1xf32>
    %50 = vector.broadcast %49 : vector<8x1xf32> to vector<8x8xf32>
    %51 = arith.mulf %46, %50 : vector<8x8xf32>
    %52 = arith.truncf %51 : vector<8x8xf32> to vector<8x8xbf16>
    %cst_15 = arith.constant dense<0.000000e+00> : vector<8x32xf32>
    %53 = tpu.matmul %52, %39, %cst_15 {dimension_numbers = #tpu.dot_dimension_numbers<[1], [0], [0], [1], [0, 0, 1, 1], [], []>} : vector<8x8xbf16>, vector<8x32xbf16>, vector<8x32xf32> -> vector<8x32xf32>
    %c0_16 = arith.constant 0 : index
    %c32 = arith.constant 32 : index
    %54 = vector.load %arg6[%c0_16, %c32] : memref<8x256xf32, #tpu.memory_space<vmem>>, vector<8x32xf32>
    tpu.vector_store %arg6[%c0_16, %c32], %53 {strides = array<i32>} : memref<8x256xf32, #tpu.memory_space<vmem>>, vector<8x32xf32>,
    %55 = vector.extract_strided_slice %4 {offsets = [0, 64], sizes = [8, 32], strides = [1, 1]} : vector<8x256xf32> to vector<8x32xf32>
    %56 = arith.truncf %55 : vector<8x32xf32> to vector<8x32xbf16>
    %57 = vector.extract_strided_slice %5 {offsets = [0, 64], sizes = [8, 32], strides = [1, 1]} : vector<8x256xf32> to vector<8x32xf32>
    %58 = arith.truncf %57 : vector<8x32xf32> to vector<8x32xbf16>
    %59 = vector.extract_strided_slice %6 {offsets = [0, 64], sizes = [8, 32], strides = [1, 1]} : vector<8x256xf32> to vector<8x32xf32>
    %60 = arith.truncf %59 : vector<8x32xf32> to vector<8x32xbf16>
    %cst_17 = arith.constant dense<0.000000e+00> : vector<8x8xf32>
    %61 = tpu.matmul %56, %58, %cst_17 {dimension_numbers = #tpu.dot_dimension_numbers<[1], [1], [0], [0], [0, 0, 1, 0], [], []>} : vector<8x32xbf16>, vector<8x32xbf16>, vector<8x8xf32> -> vector<8x8xf32>
    %62 = arith.addf %61, %12 : vector<8x8xf32>
    %cst_18 = arith.constant dense<0xFF800000> : vector<8xf32>
    %63 = vector.multi_reduction <maximumf>, %62, %cst_18 [1] : vector<8x8xf32> to vector<8xf32>
    %64 = vector.shape_cast %63 : vector<8xf32> to vector<8x1xf32>
    %65 = vector.broadcast %64 : vector<8x1xf32> to vector<8x8xf32>
    %66 = arith.subf %62, %65 : vector<8x8xf32>
    %67 = math.exp %66 : vector<8x8xf32>
    %cst_19 = arith.constant dense<0.000000e+00> : vector<8xf32>
    %68 = vector.multi_reduction <add>, %67, %cst_19 [1] : vector<8x8xf32> to vector<8xf32>
    %69 = vector.shape_cast %68 : vector<8xf32> to vector<8x1xf32>
    %70 = tpu.reciprocal %69 : vector<8x1xf32> -> vector<8x1xf32>
    %71 = vector.broadcast %70 : vector<8x1xf32> to vector<8x8xf32>
    %72 = arith.mulf %67, %71 : vector<8x8xf32>
    %73 = arith.truncf %72 : vector<8x8xf32> to vector<8x8xbf16>
    %cst_20 = arith.constant dense<0.000000e+00> : vector<8x32xf32>
    %74 = tpu.matmul %73, %60, %cst_20 {dimension_numbers = #tpu.dot_dimension_numbers<[1], [0], [0], [1], [0, 0, 1, 1], [], []>} : vector<8x8xbf16>, vector<8x32xbf16>, vector<8x32xf32> -> vector<8x32xf32>
    %c0_21 = arith.constant 0 : index
    %c64 = arith.constant 64 : index
    %75 = vector.load %arg6[%c0_21, %c64] : memref<8x256xf32, #tpu.memory_space<vmem>>, vector<8x32xf32>
    tpu.vector_store %arg6[%c0_21, %c64], %74 {strides = array<i32>} : memref<8x256xf32, #tpu.memory_space<vmem>>, vector<8x32xf32>,
    %76 = vector.extract_strided_slice %4 {offsets = [0, 96], sizes = [8, 32], strides = [1, 1]} : vector<8x256xf32> to vector<8x32xf32>
    %77 = arith.truncf %76 : vector<8x32xf32> to vector<8x32xbf16>
    %78 = vector.extract_strided_slice %5 {offsets = [0, 96], sizes = [8, 32], strides = [1, 1]} : vector<8x256xf32> to vector<8x32xf32>
    %79 = arith.truncf %78 : vector<8x32xf32> to vector<8x32xbf16>
    %80 = vector.extract_strided_slice %6 {offsets = [0, 96], sizes = [8, 32], strides = [1, 1]} : vector<8x256xf32> to vector<8x32xf32>
    %81 = arith.truncf %80 : vector<8x32xf32> to vector<8x32xbf16>
    %cst_22 = arith.constant dense<0.000000e+00> : vector<8x8xf32>
    %82 = tpu.matmul %77, %79, %cst_22 {dimension_numbers = #tpu.dot_dimension_numbers<[1], [1], [0], [0], [0, 0, 1, 0], [], []>} : vector<8x32xbf16>, vector<8x32xbf16>, vector<8x8xf32> -> vector<8x8xf32>
    %83 = arith.addf %82, %12 : vector<8x8xf32>
    %cst_23 = arith.constant dense<0xFF800000> : vector<8xf32>
    %84 = vector.multi_reduction <maximumf>, %83, %cst_23 [1] : vector<8x8xf32> to vector<8xf32>
    %85 = vector.shape_cast %84 : vector<8xf32> to vector<8x1xf32>
    %86 = vector.broadcast %85 : vector<8x1xf32> to vector<8x8xf32>
    %87 = arith.subf %83, %86 : vector<8x8xf32>
    %88 = math.exp %87 : vector<8x8xf32>
    %cst_24 = arith.constant dense<0.000000e+00> : vector<8xf32>
    %89 = vector.multi_reduction <add>, %88, %cst_24 [1] : vector<8x8xf32> to vector<8xf32>
    %90 = vector.shape_cast %89 : vector<8xf32> to vector<8x1xf32>
    %91 = tpu.reciprocal %90 : vector<8x1xf32> -> vector<8x1xf32>
    %92 = vector.broadcast %91 : vector<8x1xf32> to vector<8x8xf32>
    %93 = arith.mulf %88, %92 : vector<8x8xf32>
    %94 = arith.truncf %93 : vector<8x8xf32> to vector<8x8xbf16>
    %cst_25 = arith.constant dense<0.000000e+00> : vector<8x32xf32>
    %95 = tpu.matmul %94, %81, %cst_25 {dimension_numbers = #tpu.dot_dimension_numbers<[1], [0], [0], [1], [0, 0, 1, 1], [], []>} : vector<8x8xbf16>, vector<8x32xbf16>, vector<8x32xf32> -> vector<8x32xf32>
    %c0_26 = arith.constant 0 : index
    %c96 = arith.constant 96 : index
    %96 = vector.load %arg6[%c0_26, %c96] : memref<8x256xf32, #tpu.memory_space<vmem>>, vector<8x32xf32>
    tpu.vector_store %arg6[%c0_26, %c96], %95 {strides = array<i32>} : memref<8x256xf32, #tpu.memory_space<vmem>>, vector<8x32xf32>,
    %97 = vector.extract_strided_slice %4 {offsets = [0, 128], sizes = [8, 32], strides = [1, 1]} : vector<8x256xf32> to vector<8x32xf32>
    %98 = arith.truncf %97 : vector<8x32xf32> to vector<8x32xbf16>
    %99 = vector.extract_strided_slice %5 {offsets = [0, 128], sizes = [8, 32], strides = [1, 1]} : vector<8x256xf32> to vector<8x32xf32>
    %100 = arith.truncf %99 : vector<8x32xf32> to vector<8x32xbf16>
    %101 = vector.extract_strided_slice %6 {offsets = [0, 128], sizes = [8, 32], strides = [1, 1]} : vector<8x256xf32> to vector<8x32xf32>
    %102 = arith.truncf %101 : vector<8x32xf32> to vector<8x32xbf16>
    %cst_27 = arith.constant dense<0.000000e+00> : vector<8x8xf32>
    %103 = tpu.matmul %98, %100, %cst_27 {dimension_numbers = #tpu.dot_dimension_numbers<[1], [1], [0], [0], [0, 0, 1, 0], [], []>} : vector<8x32xbf16>, vector<8x32xbf16>, vector<8x8xf32> -> vector<8x8xf32>
    %104 = arith.addf %103, %12 : vector<8x8xf32>
    %cst_28 = arith.constant dense<0xFF800000> : vector<8xf32>
    %105 = vector.multi_reduction <maximumf>, %104, %cst_28 [1] : vector<8x8xf32> to vector<8xf32>
    %106 = vector.shape_cast %105 : vector<8xf32> to vector<8x1xf32>
    %107 = vector.broadcast %106 : vector<8x1xf32> to vector<8x8xf32>
    %108 = arith.subf %104, %107 : vector<8x8xf32>
    %109 = math.exp %108 : vector<8x8xf32>
    %cst_29 = arith.constant dense<0.000000e+00> : vector<8xf32>
    %110 = vector.multi_reduction <add>, %109, %cst_29 [1] : vector<8x8xf32> to vector<8xf32>
    %111 = vector.shape_cast %110 : vector<8xf32> to vector<8x1xf32>
    %112 = tpu.reciprocal %111 : vector<8x1xf32> -> vector<8x1xf32>
    %113 = vector.broadcast %112 : vector<8x1xf32> to vector<8x8xf32>
    %114 = arith.mulf %109, %113 : vector<8x8xf32>
    %115 = arith.truncf %114 : vector<8x8xf32> to vector<8x8xbf16>
    %cst_30 = arith.constant dense<0.000000e+00> : vector<8x32xf32>
    %116 = tpu.matmul %115, %102, %cst_30 {dimension_numbers = #tpu.dot_dimension_numbers<[1], [0], [0], [1], [0, 0, 1, 1], [], []>} : vector<8x8xbf16>, vector<8x32xbf16>, vector<8x32xf32> -> vector<8x32xf32>
    %c0_31 = arith.constant 0 : index
    %c128 = arith.constant 128 : index
    %117 = vector.load %arg6[%c0_31, %c128] : memref<8x256xf32, #tpu.memory_space<vmem>>, vector<8x32xf32>
    tpu.vector_store %arg6[%c0_31, %c128], %116 {strides = array<i32>} : memref<8x256xf32, #tpu.memory_space<vmem>>, vector<8x32xf32>,
    %118 = vector.extract_strided_slice %4 {offsets = [0, 160], sizes = [8, 32], strides = [1, 1]} : vector<8x256xf32> to vector<8x32xf32>
    %119 = arith.truncf %118 : vector<8x32xf32> to vector<8x32xbf16>
    %120 = vector.extract_strided_slice %5 {offsets = [0, 160], sizes = [8, 32], strides = [1, 1]} : vector<8x256xf32> to vector<8x32xf32>
    %121 = arith.truncf %120 : vector<8x32xf32> to vector<8x32xbf16>
    %122 = vector.extract_strided_slice %6 {offsets = [0, 160], sizes = [8, 32], strides = [1, 1]} : vector<8x256xf32> to vector<8x32xf32>
    %123 = arith.truncf %122 : vector<8x32xf32> to vector<8x32xbf16>
    %cst_32 = arith.constant dense<0.000000e+00> : vector<8x8xf32>
    %124 = tpu.matmul %119, %121, %cst_32 {dimension_numbers = #tpu.dot_dimension_numbers<[1], [1], [0], [0], [0, 0, 1, 0], [], []>} : vector<8x32xbf16>, vector<8x32xbf16>, vector<8x8xf32> -> vector<8x8xf32>
    %125 = arith.addf %124, %12 : vector<8x8xf32>
    %cst_33 = arith.constant dense<0xFF800000> : vector<8xf32>
    %126 = vector.multi_reduction <maximumf>, %125, %cst_33 [1] : vector<8x8xf32> to vector<8xf32>
    %127 = vector.shape_cast %126 : vector<8xf32> to vector<8x1xf32>
    %128 = vector.broadcast %127 : vector<8x1xf32> to vector<8x8xf32>
    %129 = arith.subf %125, %128 : vector<8x8xf32>
    %130 = math.exp %129 : vector<8x8xf32>
    %cst_34 = arith.constant dense<0.000000e+00> : vector<8xf32>
    %131 = vector.multi_reduction <add>, %130, %cst_34 [1] : vector<8x8xf32> to vector<8xf32>
    %132 = vector.shape_cast %131 : vector<8xf32> to vector<8x1xf32>
    %133 = tpu.reciprocal %132 : vector<8x1xf32> -> vector<8x1xf32>
    %134 = vector.broadcast %133 : vector<8x1xf32> to vector<8x8xf32>
    %135 = arith.mulf %130, %134 : vector<8x8xf32>
    %136 = arith.truncf %135 : vector<8x8xf32> to vector<8x8xbf16>
    %cst_35 = arith.constant dense<0.000000e+00> : vector<8x32xf32>
    %137 = tpu.matmul %136, %123, %cst_35 {dimension_numbers = #tpu.dot_dimension_numbers<[1], [0], [0], [1], [0, 0, 1, 1], [], []>} : vector<8x8xbf16>, vector<8x32xbf16>, vector<8x32xf32> -> vector<8x32xf32>
    %c0_36 = arith.constant 0 : index
    %c160 = arith.constant 160 : index
    %138 = vector.load %arg6[%c0_36, %c160] : memref<8x256xf32, #tpu.memory_space<vmem>>, vector<8x32xf32>
    tpu.vector_store %arg6[%c0_36, %c160], %137 {strides = array<i32>} : memref<8x256xf32, #tpu.memory_space<vmem>>, vector<8x32xf32>,
    %139 = vector.extract_strided_slice %4 {offsets = [0, 192], sizes = [8, 32], strides = [1, 1]} : vector<8x256xf32> to vector<8x32xf32>
    %140 = arith.truncf %139 : vector<8x32xf32> to vector<8x32xbf16>
    %141 = vector.extract_strided_slice %5 {offsets = [0, 192], sizes = [8, 32], strides = [1, 1]} : vector<8x256xf32> to vector<8x32xf32>
    %142 = arith.truncf %141 : vector<8x32xf32> to vector<8x32xbf16>
    %143 = vector.extract_strided_slice %6 {offsets = [0, 192], sizes = [8, 32], strides = [1, 1]} : vector<8x256xf32> to vector<8x32xf32>
    %144 = arith.truncf %143 : vector<8x32xf32> to vector<8x32xbf16>
    %cst_37 = arith.constant dense<0.000000e+00> : vector<8x8xf32>
    %145 = tpu.matmul %140, %142, %cst_37 {dimension_numbers = #tpu.dot_dimension_numbers<[1], [1], [0], [0], [0, 0, 1, 0], [], []>} : vector<8x32xbf16>, vector<8x32xbf16>, vector<8x8xf32> -> vector<8x8xf32>
    %146 = arith.addf %145, %12 : vector<8x8xf32>
    %cst_38 = arith.constant dense<0xFF800000> : vector<8xf32>
    %147 = vector.multi_reduction <maximumf>, %146, %cst_38 [1] : vector<8x8xf32> to vector<8xf32>
    %148 = vector.shape_cast %147 : vector<8xf32> to vector<8x1xf32>
    %149 = vector.broadcast %148 : vector<8x1xf32> to vector<8x8xf32>
    %150 = arith.subf %146, %149 : vector<8x8xf32>
    %151 = math.exp %150 : vector<8x8xf32>
    %cst_39 = arith.constant dense<0.000000e+00> : vector<8xf32>
    %152 = vector.multi_reduction <add>, %151, %cst_39 [1] : vector<8x8xf32> to vector<8xf32>
    %153 = vector.shape_cast %152 : vector<8xf32> to vector<8x1xf32>
    %154 = tpu.reciprocal %153 : vector<8x1xf32> -> vector<8x1xf32>
    %155 = vector.broadcast %154 : vector<8x1xf32> to vector<8x8xf32>
    %156 = arith.mulf %151, %155 : vector<8x8xf32>
    %157 = arith.truncf %156 : vector<8x8xf32> to vector<8x8xbf16>
    %cst_40 = arith.constant dense<0.000000e+00> : vector<8x32xf32>
    %158 = tpu.matmul %157, %144, %cst_40 {dimension_numbers = #tpu.dot_dimension_numbers<[1], [0], [0], [1], [0, 0, 1, 1], [], []>} : vector<8x8xbf16>, vector<8x32xbf16>, vector<8x32xf32> -> vector<8x32xf32>
    %c0_41 = arith.constant 0 : index
    %c192 = arith.constant 192 : index
    %159 = vector.load %arg6[%c0_41, %c192] : memref<8x256xf32, #tpu.memory_space<vmem>>, vector<8x32xf32>
    tpu.vector_store %arg6[%c0_41, %c192], %158 {strides = array<i32>} : memref<8x256xf32, #tpu.memory_space<vmem>>, vector<8x32xf32>,
    %160 = vector.extract_strided_slice %4 {offsets = [0, 224], sizes = [8, 32], strides = [1, 1]} : vector<8x256xf32> to vector<8x32xf32>
    %161 = arith.truncf %160 : vector<8x32xf32> to vector<8x32xbf16>
    %162 = vector.extract_strided_slice %5 {offsets = [0, 224], sizes = [8, 32], strides = [1, 1]} : vector<8x256xf32> to vector<8x32xf32>
    %163 = arith.truncf %162 : vector<8x32xf32> to vector<8x32xbf16>
    %164 = vector.extract_strided_slice %6 {offsets = [0, 224], sizes = [8, 32], strides = [1, 1]} : vector<8x256xf32> to vector<8x32xf32>
    %165 = arith.truncf %164 : vector<8x32xf32> to vector<8x32xbf16>
    %cst_42 = arith.constant dense<0.000000e+00> : vector<8x8xf32>
    %166 = tpu.matmul %161, %163, %cst_42 {dimension_numbers = #tpu.dot_dimension_numbers<[1], [1], [0], [0], [0, 0, 1, 0], [], []>} : vector<8x32xbf16>, vector<8x32xbf16>, vector<8x8xf32> -> vector<8x8xf32>
    %167 = arith.addf %166, %12 : vector<8x8xf32>
    %cst_43 = arith.constant dense<0xFF800000> : vector<8xf32>
    %168 = vector.multi_reduction <maximumf>, %167, %cst_43 [1] : vector<8x8xf32> to vector<8xf32>
    %169 = vector.shape_cast %168 : vector<8xf32> to vector<8x1xf32>
    %170 = vector.broadcast %169 : vector<8x1xf32> to vector<8x8xf32>
    %171 = arith.subf %167, %170 : vector<8x8xf32>
    %172 = math.exp %171 : vector<8x8xf32>
    %cst_44 = arith.constant dense<0.000000e+00> : vector<8xf32>
    %173 = vector.multi_reduction <add>, %172, %cst_44 [1] : vector<8x8xf32> to vector<8xf32>
    %174 = vector.shape_cast %173 : vector<8xf32> to vector<8x1xf32>
    %175 = tpu.reciprocal %174 : vector<8x1xf32> -> vector<8x1xf32>
    %176 = vector.broadcast %175 : vector<8x1xf32> to vector<8x8xf32>
    %177 = arith.mulf %172, %176 : vector<8x8xf32>
    %178 = arith.truncf %177 : vector<8x8xf32> to vector<8x8xbf16>
    %cst_45 = arith.constant dense<0.000000e+00> : vector<8x32xf32>
    %179 = tpu.matmul %178, %165, %cst_45 {dimension_numbers = #tpu.dot_dimension_numbers<[1], [0], [0], [1], [0, 0, 1, 1], [], []>} : vector<8x8xbf16>, vector<8x32xbf16>, vector<8x32xf32> -> vector<8x32xf32>
    %c0_46 = arith.constant 0 : index
    %c224 = arith.constant 224 : index
    %180 = vector.load %arg6[%c0_46, %c224] : memref<8x256xf32, #tpu.memory_space<vmem>>, vector<8x32xf32>
    tpu.vector_store %arg6[%c0_46, %c224], %179 {strides = array<i32>} : memref<8x256xf32, #tpu.memory_space<vmem>>, vector<8x32xf32>,
    %c0_47 = arith.constant 0 : index
    %c0_48 = arith.constant 0 : index
    %181 = vector.load %arg6[%c0_47, %c0_48] : memref<8x256xf32, #tpu.memory_space<vmem>>, vector<8x256xf32>
    %182 = arith.truncf %181 : vector<8x256xf32> to vector<8x256xbf16>
    %c0_49 = arith.constant 0 : index
    %c0_50 = arith.constant 0 : index
    %183 = vector.load %arg3[%c0_49, %c0_50] : memref<32x256xbf16, #tpu.memory_space<vmem>>, vector<32x256xbf16>
    %cst_51 = arith.constant dense<0.000000e+00> : vector<8x32xf32>
    %184 = tpu.matmul %182, %183, %cst_51 {dimension_numbers = #tpu.dot_dimension_numbers<[1], [1], [0], [0], [0, 0, 1, 0], [], []>} : vector<8x256xbf16>, vector<32x256xbf16>, vector<8x32xf32> -> vector<8x32xf32>
    %c0_52 = arith.constant 0 : index
    %c0_53 = arith.constant 0 : index
    %185 = vector.load %arg4[%c0_52, %c0_53] : memref<1x32xf32, #tpu.memory_space<vmem>>, vector<1x32xf32>
    %186 = vector.broadcast %185 : vector<1x32xf32> to vector<8x32xf32>
    %187 = arith.addf %184, %186 : vector<8x32xf32>
    %188 = vector.shape_cast %187 : vector<8x32xf32> to vector<1x8x32xf32>
    %c0_54 = arith.constant 0 : index
    %c0_55 = arith.constant 0 : index
    %c0_56 = arith.constant 0 : index
    %189 = vector.load %arg5[%c0_54, %c0_55, %c0_56] : memref<1x8x32xf32, #tpu.memory_space<vmem>>, vector<1x8x32xf32>
    tpu.vector_store %arg5[%c0_54, %c0_55, %c0_56], %188 {strides = array<i32>} : memref<1x8x32xf32, #tpu.memory_space<vmem>>, vector<1x8x32xf32>,
    return
  }
  func.func @transform_0(%arg0: i32) -> (i32, i32, i32) {
    %c0_i32 = arith.constant 0 : i32
    %c0_i32_0 = arith.constant 0 : i32
    %c0_i32_1 = arith.constant 0 : i32
    return %arg0, %c0_i32, %c0_i32_0 : i32, i32, i32
  }
  func.func @transform_1(%arg0: i32) -> (i32, i32) {
    %c0_i32 = arith.constant 0 : i32
    %c0_i32_0 = arith.constant 0 : i32
    %c0_i32_1 = arith.constant 0 : i32
    return %c0_i32, %c0_i32_0 : i32, i32
  }
  func.func @transform_2(%arg0: i32) -> (i32, i32) {
    %c0_i32 = arith.constant 0 : i32
    %c0_i32_0 = arith.constant 0 : i32
    %c0_i32_1 = arith.constant 0 : i32
    return %c0_i32, %c0_i32_0 : i32, i32
  }
  func.func @transform_3(%arg0: i32) -> (i32, i32) {
    %c0_i32 = arith.constant 0 : i32
    %c0_i32_0 = arith.constant 0 : i32
    %c0_i32_1 = arith.constant 0 : i32
    return %c0_i32, %c0_i32_0 : i32, i32
  }
  func.func @transform_4(%arg0: i32) -> (i32, i32, i32) {
    %c0_i32 = arith.constant 0 : i32
    %c0_i32_0 = arith.constant 0 : i32
    %c0_i32_1 = arith.constant 0 : i32
    return %arg0, %c0_i32, %c0_i32_0 : i32, i32, i32
  }
}

</mosaic_0001>

<llo_original>
// kernel: tpu_custom_call.1
$region0: #{tpu_custom_call.1}
  #allocation0 [shape = 'u32[]', space=smem, size = 0x4, offset = 0x4, fixed_abs, tag = 'smem constant byte address 0x4 - core index']
  #allocation1 [shape = 'u32[144,128]{1,0:T(1,128)}', space=vmem, size = 0x12000, scoped, tag = 'internal scratch']
  #allocation2 [shape = 'f32[8,256]{1,0:T(8,128)}', space=vmem, size = 0x2000, scoped, tag = 'scratch operand']
  %s0 = inlined_call_operand.hbm [shape: bf16[2,8,32], index: 0, kind: input, shape index: {}]
  %s1 = inlined_call_operand.hbm [shape: bf16[32,768], index: 1, kind: input, shape index: {}]
  %s2 = inlined_call_operand.hbm [shape: bf16[32,256], index: 2, kind: input, shape index: {}]
  %s3 = inlined_call_operand.vmem [shape: f32[1,32], index: 3, kind: input, shape index: {}]
  %s4 = inlined_call_operand.hbm [shape: f32[2,8,32], index: 4, kind: output, shape index: {}]
  %s5 = sld [smem:[#allocation0]]
  $region61: #{tpu_custom_call.1} parent=0
    _
  %s7 = ssub.s32 1, %s5
  %s8 = scalar_select 0, %s7, %s5
  $region1: #{tpu_custom_call.1} parent=0
    #allocation3 [shape = 'u8[4096]{0}', space=vmem, size = 0x1000, scoped, tag = 'input window, operand 0']
    #allocation4 [shape = 's32[2]{0}', space=sflag, size = 0x8, scoped, tag = 'scoped memory for tpu_custom_call.1']
    #allocation5 [shape = 's32[2]{0}', space=sflag, size = 0x8, scoped, tag = 'scoped memory for tpu_custom_call.1']
    #allocation6 [shape = 'u8[49152]{0}', space=vmem, size = 0xc000, scoped, tag = 'input window, operand 1, single buffered']
    #allocation7 [shape = 's32[1]{0}', space=sflag, size = 0x4, scoped, tag = 'scoped memory for tpu_custom_call.1']
    #allocation8 [shape = 'u8[16384]{0}', space=vmem, size = 0x4000, scoped, tag = 'input window, operand 2, single buffered']
    #allocation9 [shape = 'u8[8192]{0}', space=vmem, size = 0x2000, scoped, tag = 'output window, operand 0']
    %9 = vsyncpa [#allocation4], 0
    %s10 = scalar_lea.sflag [#allocation4], 1
    %11 = vsyncpa %s10, 0
    %12 = vsyncpa [#allocation7], 0
    %13 = vsyncpa [#allocation5], 0
    %s14 = scalar_lea.sflag [#allocation5], 1
    %15 = vsyncpa %s14, 0
    loop: start=0, step=1, limit=4
    $region2: #{tpu_custom_call.1} parent=1 // loop_pre_header
      _
    $region3: #{tpu_custom_call.1} parent=1 // loop_header
      %s17 = sphi 0, %s21
      %p18 = scmp.ge.s32.totalorder %s17, 4
      %s27 = sphi 0, %s29
      %s30 = sphi 0, %s27
      %s31 = sphi 0, %s30
      %s47 = sphi 0, %s31
      %s51 = sphi 0, %s51
      %s53 = sphi 0, %s51
      %s54 = sphi 0, %s53
      %s68 = sphi 0, %s54
      %s72 = sphi 0, %s72
      %s74 = sphi 0, %s72
      %s75 = sphi 0, %s74
      %s89 = sphi 0, %s75
      %s93 = sphi 0, %s93
      %s95 = sphi 0, %s93
      %s96 = sphi 0, %s95
      %s110 = sphi 0, %s96
      %s116 = sphi 0, %s118
      %s119 = sphi 0, %s116
      %s120 = sphi 0, %s119
      %s136 = sphi 0, %s120
    $region4: #{tpu_custom_call.1} parent=1 // loop_header_branch
      %20 = sbr.rel (%p18) target = $region8
    $region5: #{tpu_custom_call.1} parent=1 // loop_body
      %s22 = ssub.s32 %s17, 1
      %s23 = ssub.s32 %s17, 2
      %s24 = sadd.s32 %s17, 1
      %s25 = ssub.s32 %s17, %s24
      %p26 = scmp.eq.s32.totalorder %s25, 0
      %s28 = sadd.s32 %s27, 1
      %s29 = scalar_select %p26, %s27, %s28
      %p32 = pneg %p26
      %p33 = scmp.eq.s32.totalorder %s17, 1
      %p34 = por %p32, %p33
      %p35 = scmp.ne.s32.totalorder %s27, %s30
      %p36 = scmp.eq.s32.totalorder %s17, 0
      %p37 = por %p35, %p36
      %p38 = scmp.ne.s32.totalorder %s27, %s30
      %p39 = scmp.eq.s32.totalorder %s22, 1
      %p40 = por %p38, %p39
      %p41 = scmp.ne.s32.totalorder %s30, %s31
      %p42 = scmp.eq.s32.totalorder %s22, 0
      %p43 = por %p41, %p42
      %p44 = scmp.ne.s32.totalorder %s30, %s31
      %p45 = scmp.eq.s32.totalorder %s23, 1
      %p46 = por %p44, %p45
      %p48 = scmp.ne.s32.totalorder %s31, %s47
      %p49 = scmp.eq.s32.totalorder %s23, 0
      %p50 = por %p48, %p49
      %s52 = sadd.s32 %s51, 1
      %p55 = scmp.eq.s32.totalorder %s17, 1
      %p56 = scmp.ne.s32.totalorder %s51, %s53
      %p57 = scmp.eq.s32.totalorder %s17, 0
      %p58 = por %p56, %p57
      %p59 = scmp.ne.s32.totalorder %s51, %s53
      %p60 = scmp.eq.s32.totalorder %s22, 1
      %p61 = por %p59, %p60
      %p62 = scmp.ne.s32.totalorder %s53, %s54
      %p63 = scmp.eq.s32.totalorder %s22, 0
      %p64 = por %p62, %p63
      %p65 = scmp.ne.s32.totalorder %s53, %s54
      %p66 = scmp.eq.s32.totalorder %s23, 1
      %p67 = por %p65, %p66
      %p69 = scmp.ne.s32.totalorder %s54, %s68
      %p70 = scmp.eq.s32.totalorder %s23, 0
      %p71 = por %p69, %p70
      %s73 = sadd.s32 %s72, 1
      %p76 = scmp.eq.s32.totalorder %s17, 1
      %p77 = scmp.ne.s32.totalorder %s72, %s74
      %p78 = scmp.eq.s32.totalorder %s17, 0
      %p79 = por %p77, %p78
      %p80 = scmp.ne.s32.totalorder %s72, %s74
      %p81 = scmp.eq.s32.totalorder %s22, 1
      %p82 = por %p80, %p81
      %p83 = scmp.ne.s32.totalorder %s74, %s75
      %p84 = scmp.eq.s32.totalorder %s22, 0
      %p85 = por %p83, %p84
      %p86 = scmp.ne.s32.totalorder %s74, %s75
      %p87 = scmp.eq.s32.totalorder %s23, 1
      %p88 = por %p86, %p87
      %p90 = scmp.ne.s32.totalorder %s75, %s89
      %p91 = scmp.eq.s32.totalorder %s23, 0
      %p92 = por %p90, %p91
      %s94 = sadd.s32 %s93, 1
      %p97 = scmp.eq.s32.totalorder %s17, 1
      %p98 = scmp.ne.s32.totalorder %s93, %s95
      %p99 = scmp.eq.s32.totalorder %s17, 0
      %p100 = por %p98, %p99
      %p101 = scmp.ne.s32.totalorder %s93, %s95
      %p102 = scmp.eq.s32.totalorder %s22, 1
      %p103 = por %p101, %p102
      %p104 = scmp.ne.s32.totalorder %s95, %s96
      %p105 = scmp.eq.s32.totalorder %s22, 0
      %p106 = por %p104, %p105
      %p107 = scmp.ne.s32.totalorder %s95, %s96
      %p108 = scmp.eq.s32.totalorder %s23, 1
      %p109 = por %p107, %p108
      %p111 = scmp.ne.s32.totalorder %s96, %s110
      %p112 = scmp.eq.s32.totalorder %s23, 0
      %p113 = por %p111, %p112
      %s114 = ssub.s32 %s17, %s24
      %p115 = scmp.eq.s32.totalorder %s114, 0
      %s117 = sadd.s32 %s116, 1
      %s118 = scalar_select %p115, %s116, %s117
      %p121 = pneg %p115
      %p122 = scmp.eq.s32.totalorder %s17, 1
      %p123 = por %p121, %p122
      %p124 = scmp.ne.s32.totalorder %s116, %s119
      %p125 = scmp.eq.s32.totalorder %s17, 0
      %p126 = por %p124, %p125
      %p127 = scmp.ne.s32.totalorder %s116, %s119
      %p128 = scmp.eq.s32.totalorder %s22, 1
      %p129 = por %p127, %p128
      %p130 = scmp.ne.s32.totalorder %s119, %s120
      %p131 = scmp.eq.s32.totalorder %s22, 0
      %p132 = por %p130, %p131
      %p133 = scmp.ne.s32.totalorder %s119, %s120
      %p134 = scmp.eq.s32.totalorder %s23, 1
      %p135 = por %p133, %p134
      %p137 = scmp.ne.s32.totalorder %s120, %s136
      %p138 = scmp.eq.s32.totalorder %s23, 0
      %p139 = por %p137, %p138
      %p140 = scmp.le.s32.totalorder 1, %s17
      %p141 = scmp.lt.s32.totalorder %s17, 3
      %p142 = pnand %p140, %p141
      %p143 = pneg %p142
      // Predicated region
      $region9: #{tpu_custom_call.1} parent=5 // pred_check
        _
      $region10: #{tpu_custom_call.1} parent=5 // pred_check_branch
        %145 = sbr.rel (%p142) target = $region12
      $region11: #{tpu_custom_call.1} parent=5 // pred_region
        %s146 = ssub.s32 %s17, 1
        // Predicated region
        $region13: #{tpu_custom_call.1} parent=11 // pred_check
          %p147 = pneg %p64
        $region14: #{tpu_custom_call.1} parent=11 // pred_check_branch
          %149 = sbr.rel (%p147) target = $region16
        $region15: #{tpu_custom_call.1} parent=11 // pred_region
          %s151 = ssub.s32 1536, 1536
          %152 = vsyncadd [#allocation7], %s151
          %s153 = sshll.u32 [#allocation6], 4
          %s154 = int_to_ptr.vmem [resolvable:$true] %s153
          %159 = dma.hbm_to_vmem [thread:$0]  %s1, 1536, %s154, [#allocation7], 384, 384, 24
        $region16: #{tpu_custom_call.1} parent=11 // pred_fallthru
          _
        // Predicated region
        $region17: #{tpu_custom_call.1} parent=11 // pred_check
          %p160 = pneg %p85
        $region18: #{tpu_custom_call.1} parent=11 // pred_check_branch
          %162 = sbr.rel (%p160) target = $region20
        $region19: #{tpu_custom_call.1} parent=11 // pred_region
          %s164 = ssub.s32 512, 512
          %165 = vsyncadd [#allocation7], %s164
          %s166 = sshll.u32 [#allocation8], 4
          %s167 = int_to_ptr.vmem [resolvable:$true] %s166
          %172 = dma.hbm_to_vmem [thread:$0]  %s2, 512, %s167, [#allocation7], 128, 128, 8
        $region20: #{tpu_custom_call.1} parent=11 // pred_fallthru
          _
        // Predicated region
        $region21: #{tpu_custom_call.1} parent=11 // pred_check
          %p173 = pneg %p106
        $region22: #{tpu_custom_call.1} parent=11 // pred_check_branch
          %175 = sbr.rel (%p173) target = $region24
        $region23: #{tpu_custom_call.1} parent=11 // pred_region
          _
        $region24: #{tpu_custom_call.1} parent=11 // pred_fallthru
          _
      $region12: #{tpu_custom_call.1} parent=5 // pred_fallthru
        _
      %p176 = scmp.lt.s32.totalorder %s17, 2
      // Predicated region
      $region25: #{tpu_custom_call.1} parent=5 // pred_check
        %p177 = pneg %p176
      $region26: #{tpu_custom_call.1} parent=5 // pred_check_branch
        %179 = sbr.rel (%p177) target = $region28
      $region27: #{tpu_custom_call.1} parent=5 // pred_region
        // Predicated region
        $region29: #{tpu_custom_call.1} parent=27 // pred_check
          %p180 = pneg %p37
        $region30: #{tpu_custom_call.1} parent=27 // pred_check_branch
          %182 = sbr.rel (%p180) target = $region32
        $region31: #{tpu_custom_call.1} parent=27 // pred_region
          %s183 = sand.u32 %s27, 1
          %s184 = scalar_lea.sflag [#allocation4], %s183
          %s185 = sand.u32 %s27, 1
          %s186 = smul.addr %s185, 4
          %s187 = scalar_lea.vmem [#allocation3], %s186
          %s189 = ssub.s32 64, 64
          %190 = vsyncadd %s184, %s189
          %s191 = smul.addr %s17, 64
          %s192 = scalar_lea.hbm %s0, %s191
          %s194 = sshll.u32 %s187, 4
          %s195 = int_to_ptr.vmem [resolvable:$true] %s194
          %197 = dma.hbm_to_vmem [thread:$0]  %s192, 64, %s195, %s184
        $region32: #{tpu_custom_call.1} parent=27 // pred_fallthru
          _
      $region28: #{tpu_custom_call.1} parent=5 // pred_fallthru
        _
      %p198 = scmp.le.s32.totalorder 1, %s17
      %p199 = scmp.lt.s32.totalorder %s17, 3
      %p200 = pnand %p198, %p199
      %p201 = pneg %p200
      // Predicated region
      $region33: #{tpu_custom_call.1} parent=5 // pred_check
        _
      $region34: #{tpu_custom_call.1} parent=5 // pred_check_branch
        %203 = sbr.rel (%p200) target = $region36
      $region35: #{tpu_custom_call.1} parent=5 // pred_region
        %s204 = ssub.s32 %s17, 1
        %s205 = sand.u32 %s30, 1
        %s206 = scalar_lea.sflag [#allocation4], %s205
        %s207 = sand.u32 %s30, 1
        %s208 = smul.addr %s207, 4
        %s209 = scalar_lea.vmem [#allocation3], %s208
        // Predicated region
        $region37: #{tpu_custom_call.1} parent=35 // pred_check
          %p210 = pneg %p43
        $region38: #{tpu_custom_call.1} parent=35 // pred_check_branch
          %212 = sbr.rel (%p210) target = $region40
        $region39: #{tpu_custom_call.1} parent=35 // pred_region
          %213 = dma.done %s206, 64
        $region40: #{tpu_custom_call.1} parent=35 // pred_fallthru
          _
        // Predicated region
        $region41: #{tpu_custom_call.1} parent=35 // pred_check
          %p214 = pneg %p64
        $region42: #{tpu_custom_call.1} parent=35 // pred_check_branch
          %216 = sbr.rel (%p214) target = $region44
        $region43: #{tpu_custom_call.1} parent=35 // pred_region
          %217 = dma.done [#allocation7], 1536
        $region44: #{tpu_custom_call.1} parent=35 // pred_fallthru
          _
        // Predicated region
        $region45: #{tpu_custom_call.1} parent=35 // pred_check
          %p218 = pneg %p85
        $region46: #{tpu_custom_call.1} parent=35 // pred_check_branch
          %220 = sbr.rel (%p218) target = $region48
        $region47: #{tpu_custom_call.1} parent=35 // pred_region
          %221 = dma.done [#allocation7], 512
        $region48: #{tpu_custom_call.1} parent=35 // pred_fallthru
          _
        %s222 = sand.u32 %s30, 1
        %s223 = scalar_lea.sflag [#allocation4], %s222
        %s224 = sand.u32 %s30, 1
        %s225 = smul.addr %s224, 4
        %s226 = scalar_lea.vmem [#allocation3], %s225
        %p227 = pneg %p43
        %p228 = pneg %p40
        %p229 = pneg %p64
        %p230 = pneg %p61
        %p231 = pneg %p85
        %p232 = pneg %p82
        %p233 = pneg %p106
        %p234 = pneg %p103
        %p235 = pneg %p132
        %p236 = pneg %p129
        %s237 = sand.u32 %s119, 1
        %s238 = scalar_lea.sflag [#allocation5], %s237
        %s239 = sand.u32 %s119, 1
        %s240 = smul.addr %s239, 8
        %s241 = scalar_lea.vmem [#allocation9], %s240
        %v243 = vld [vmem:[%s209] sm:$0xf]
        %v244 = vld [vmem:[#allocation6] sm:$0xff]
        %v245 = vld [vmem:[#allocation6 + $0x8] sm:$0xff]
        %v246 = vld [vmem:[#allocation6 + $0x10] sm:$0xff]
        %v247 = vld [vmem:[#allocation6 + $0x18] sm:$0xff]
        %v248 = vld [vmem:[#allocation6 + $0x20] sm:$0xff]
        %v249 = vld [vmem:[#allocation6 + $0x28] sm:$0xff]
        %v250 = vld [vmem:[#allocation6 + $0x30] sm:$0xff]
        %v251 = vld [vmem:[#allocation6 + $0x38] sm:$0xff]
        %v252 = vld [vmem:[#allocation6 + $0x40] sm:$0xff]
        %v253 = vld [vmem:[#allocation6 + $0x48] sm:$0xff]
        %v254 = vld [vmem:[#allocation6 + $0x50] sm:$0xff]
        %v255 = vld [vmem:[#allocation6 + $0x58] sm:$0xff]
        %v268 = vunpack.c.l.b16 %v244
        %v269 = vunpack.c.h.b16 %v244
        %v270 = vunpack.c.l.b16 %v245
        %v271 = vunpack.c.h.b16 %v245
        %v272 = vunpack.c.l.b16 %v246
        %v273 = vunpack.c.h.b16 %v246
        %v274 = vunpack.c.l.b16 %v247
        %v275 = vunpack.c.h.b16 %v247
        %v276 = vunpack.c.l.b16 %v248
        %v277 = vunpack.c.h.b16 %v248
        %v278 = vunpack.c.l.b16 %v249
        %v279 = vunpack.c.h.b16 %v249
        %v280 = vunpack.c.l.b16 %v250
        %v281 = vunpack.c.h.b16 %v250
        %v282 = vunpack.c.l.b16 %v251
        %v283 = vunpack.c.h.b16 %v251
        %v284 = vunpack.c.l.b16 %v252
        %v285 = vunpack.c.h.b16 %v252
        %v286 = vunpack.c.l.b16 %v253
        %v287 = vunpack.c.h.b16 %v253
        %v288 = vunpack.c.l.b16 %v254
        %v289 = vunpack.c.h.b16 %v254
        %v290 = vunpack.c.l.b16 %v255
        %v291 = vunpack.c.h.b16 %v255
        %v292 = vpack.c.b16 %v274, %v268
        %v293 = vpack.c.b16 %v275, %v269
        %v294 = vpack.c.b16 %v276, %v270
        %v295 = vpack.c.b16 %v277, %v271
        %v296 = vpack.c.b16 %v278, %v272
        %v297 = vpack.c.b16 %v279, %v273
        %v298 = vpack.c.b16 %v286, %v280
        %v299 = vpack.c.b16 %v287, %v281
        %v300 = vpack.c.b16 %v288, %v282
        %v301 = vpack.c.b16 %v289, %v283
        %v302 = vpack.c.b16 %v290, %v284
        %v303 = vpack.c.b16 %v291, %v285
        %vm316 = vcmask 261120
        %v318 = vsel %vm316, %v243, 0
        %320 = vmatprep.subr.bf16.mxu0 %v293
        %321 = vmatpush1.bf16.msra.mxu0 %v292
        %322 = vmatprep.subr.bf16.mxu0 %v299
        %323 = vmatpush1.bf16.msra.mxu0 %v298
        %324 = vmatprep.subr.bf16.mxu0 0
        %325 = vmatpush1.bf16.msra.mxu0 0
        %326 = vmatprep.subr.bf16.mxu0 0
        %327 = vmatpush1.bf16.msra.mxu0 0
        %328 = vmatprep.subr.bf16.mxu0 0
        %329 = vmatpush1.bf16.msra.mxu0 0
        %330 = vmatprep.subr.bf16.mxu0 0
        %331 = vmatpush1.bf16.msra.mxu0 0
        %332 = vmatprep.subr.bf16.mxu0 0
        %333 = vmatpush1.bf16.msra.mxu0 0
        %334 = vmatprep.subr.bf16.mxu0 0
        %335 = vmatpush1.bf16.msra.mxu0 0
        %336 = vmatprep.subr.bf16.mxu0 0
        %337 = vmatpush1.bf16.msra.mxu0 0
        %338 = vmatprep.subr.bf16.mxu0 0
        %339 = vmatpush1.bf16.msra.mxu0 0
        %340 = vmatprep.subr.bf16.mxu0 0
        %341 = vmatpush1.bf16.msra.mxu0 0
        %342 = vmatprep.subr.bf16.mxu0 0
        %343 = vmatpush1.bf16.msra.mxu0 0
        %344 = vmatprep.subr.bf16.mxu0 0
        %345 = vmatpush1.bf16.msra.mxu0 0
        %346 = vmatprep.subr.bf16.mxu0 0
        %347 = vmatpush1.bf16.msra.mxu0 0
        %348 = vmatprep.subr.bf16.mxu0 0
        %349 = vmatpush1.bf16.msra.mxu0 0
        %350 = vmatprep.subr.bf16.mxu0 0
        %351 = vmatpush1.bf16.msra.mxu0 0
        %352 = vmatprep.mubr.bf16.mxu0 0
        %353 = vmatmul.mubr.bf16.gmra.mrb[0].mxu0 %v318
        %v354 = vpop.f32.mrb[0].mxu0
        %v355 = vadd.f32 0.0, %v354
        %v356 = vpop.f32.mrb[0].mxu0
        %v357 = vadd.f32 0.0, %v356
        %v358 = vpop.f32.mrb[0].mxu0
        %v359 = vpop.f32.mrb[0].mxu0
        %360 = vdwg.mxu0
        %361 = vmatprep.subr.bf16.mxu0 %v295
        %362 = vmatpush1.bf16.msra.mxu0 %v294
        %363 = vmatprep.subr.bf16.mxu0 %v301
        %364 = vmatpush1.bf16.msra.mxu0 %v300
        %365 = vmatprep.subr.bf16.mxu0 0
        %366 = vmatpush1.bf16.msra.mxu0 0
        %367 = vmatprep.subr.bf16.mxu0 0
        %368 = vmatpush1.bf16.msra.mxu0 0
        %369 = vmatprep.subr.bf16.mxu0 0
        %370 = vmatpush1.bf16.msra.mxu0 0
        %371 = vmatprep.subr.bf16.mxu0 0
        %372 = vmatpush1.bf16.msra.mxu0 0
        %373 = vmatprep.subr.bf16.mxu0 0
        %374 = vmatpush1.bf16.msra.mxu0 0
        %375 = vmatprep.subr.bf16.mxu0 0
        %376 = vmatpush1.bf16.msra.mxu0 0
        %377 = vmatprep.subr.bf16.mxu0 0
        %378 = vmatpush1.bf16.msra.mxu0 0
        %379 = vmatprep.subr.bf16.mxu0 0
        %380 = vmatpush1.bf16.msra.mxu0 0
        %381 = vmatprep.subr.bf16.mxu0 0
        %382 = vmatpush1.bf16.msra.mxu0 0
        %383 = vmatprep.subr.bf16.mxu0 0
        %384 = vmatpush1.bf16.msra.mxu0 0
        %385 = vmatprep.subr.bf16.mxu0 0
        %386 = vmatpush1.bf16.msra.mxu0 0
        %387 = vmatprep.subr.bf16.mxu0 0
        %388 = vmatpush1.bf16.msra.mxu0 0
        %389 = vmatprep.subr.bf16.mxu0 0
        %390 = vmatpush1.bf16.msra.mxu0 0
        %391 = vmatprep.subr.bf16.mxu0 0
        %392 = vmatpush1.bf16.msra.mxu0 0
        %393 = vmatprep.mubr.bf16.mxu0 0
        %394 = vmatmul.mubr.bf16.gmra.mrb[0].mxu0 %v318
        %v395 = vpop.f32.mrb[0].mxu0
        %v396 = vadd.f32 0.0, %v395
        %v397 = vpop.f32.mrb[0].mxu0
        %v398 = vadd.f32 0.0, %v397
        %v399 = vpop.f32.mrb[0].mxu0
        %v400 = vpop.f32.mrb[0].mxu0
        %401 = vdwg.mxu0
        %402 = vmatprep.subr.bf16.mxu0 %v297
        %403 = vmatpush1.bf16.msra.mxu0 %v296
        %404 = vmatprep.subr.bf16.mxu0 %v303
        %405 = vmatpush1.bf16.msra.mxu0 %v302
        %406 = vmatprep.subr.bf16.mxu0 0
        %407 = vmatpush1.bf16.msra.mxu0 0
        %408 = vmatprep.subr.bf16.mxu0 0
        %409 = vmatpush1.bf16.msra.mxu0 0
        %410 = vmatprep.subr.bf16.mxu0 0
        %411 = vmatpush1.bf16.msra.mxu0 0
        %412 = vmatprep.subr.bf16.mxu0 0
        %413 = vmatpush1.bf16.msra.mxu0 0
        %414 = vmatprep.subr.bf16.mxu0 0
        %415 = vmatpush1.bf16.msra.mxu0 0
        %416 = vmatprep.subr.bf16.mxu0 0
        %417 = vmatpush1.bf16.msra.mxu0 0
        %418 = vmatprep.subr.bf16.mxu0 0
        %419 = vmatpush1.bf16.msra.mxu0 0
        %420 = vmatprep.subr.bf16.mxu0 0
        %421 = vmatpush1.bf16.msra.mxu0 0
        %422 = vmatprep.subr.bf16.mxu0 0
        %423 = vmatpush1.bf16.msra.mxu0 0
        %424 = vmatprep.subr.bf16.mxu0 0
        %425 = vmatpush1.bf16.msra.mxu0 0
        %426 = vmatprep.subr.bf16.mxu0 0
        %427 = vmatpush1.bf16.msra.mxu0 0
        %428 = vmatprep.subr.bf16.mxu0 0
        %429 = vmatpush1.bf16.msra.mxu0 0
        %430 = vmatprep.subr.bf16.mxu0 0
        %431 = vmatpush1.bf16.msra.mxu0 0
        %432 = vmatprep.subr.bf16.mxu0 0
        %433 = vmatpush1.bf16.msra.mxu0 0
        %434 = vmatprep.mubr.bf16.mxu0 0
        %435 = vmatmul.mubr.bf16.gmra.mrb[0].mxu0 %v318
        %v436 = vpop.f32.mrb[0].mxu0
        %v437 = vadd.f32 0.0, %v436
        %v438 = vpop.f32.mrb[0].mxu0
        %v439 = vadd.f32 0.0, %v438
        %v440 = vpop.f32.mrb[0].mxu0
        %v441 = vpop.f32.mrb[0].mxu0
        %442 = vdwg.mxu0
        %v443 = vlaneseq
        %v444 = vshrl.u32 %v443, 7
        %v445 = vlaneseq
        %v446 = vand.u32 %v445, 127
        %vm447 = vcmp.gt.s32.totalorder %v446, %v444
        %v448 = vsel %vm447, -1e+30, 0.0
        %v449 = vpack.c.bf16 %v355, %v355
        %v450 = vpack.c.bf16 %v396, %v396
        %v451 = vpack.c.bf16 %v437, %v437
        %v453 = vsel %vm316, %v449, 0
        %v456 = vsel %vm316, %v450, 0
        %458 = vmatprep.subr.bf16.mxu0 0
        %459 = vmatpush1.bf16.xpose.msra.mxu0 %v456
        %460 = vmatprep.subr.bf16.mxu0 0
        %461 = vmatpush1.bf16.xpose.msra.mxu0 0
        %462 = vmatprep.subr.bf16.mxu0 0
        %463 = vmatpush1.bf16.xpose.msra.mxu0 0
        %464 = vmatprep.subr.bf16.mxu0 0
        %465 = vmatpush1.bf16.xpose.msra.mxu0 0
        %466 = vmatprep.subr.bf16.mxu0 0
        %467 = vmatpush1.bf16.xpose.msra.mxu0 0
        %468 = vmatprep.subr.bf16.mxu0 0
        %469 = vmatpush1.bf16.xpose.msra.mxu0 0
        %470 = vmatprep.subr.bf16.mxu0 0
        %471 = vmatpush1.bf16.xpose.msra.mxu0 0
        %472 = vmatprep.subr.bf16.mxu0 0
        %473 = vmatpush1.bf16.xpose.msra.mxu0 0
        %474 = vmatprep.subr.bf16.mxu0 0
        %475 = vmatpush1.bf16.xpose.msra.mxu0 0
        %476 = vmatprep.subr.bf16.mxu0 0
        %477 = vmatpush1.bf16.xpose.msra.mxu0 0
        %478 = vmatprep.subr.bf16.mxu0 0
        %479 = vmatpush1.bf16.xpose.msra.mxu0 0
        %480 = vmatprep.subr.bf16.mxu0 0
        %481 = vmatpush1.bf16.xpose.msra.mxu0 0
        %482 = vmatprep.subr.bf16.mxu0 0
        %483 = vmatpush1.bf16.xpose.msra.mxu0 0
        %484 = vmatprep.subr.bf16.mxu0 0
        %485 = vmatpush1.bf16.xpose.msra.mxu0 0
        %486 = vmatprep.subr.bf16.mxu0 0
        %487 = vmatpush1.bf16.xpose.msra.mxu0 0
        %488 = vmatprep.subr.bf16.mxu0 0
        %489 = vmatpush1.bf16.xpose.msra.mxu0 0
        %490 = vmatprep.mubr.bf16.mxu0 0
        %491 = vmatmul.mubr.bf16.gmra.mrb[0].mxu0 %v453
        %v492 = vpop.f32.mrb[0].mxu0
        %v493 = vadd.f32 %v448, %v492
        %v494 = vpop.f32.mrb[0].mxu0
        %v495 = vpop.f32.mrb[0].mxu0
        %v496 = vpop.f32.mrb[0].mxu0
        %497 = vdwg.mxu0
        %vm498 = vcmask 64512
        %v499 = vsel %vm498, %v493, -inf
        %500 = vmax.xlane.f32.xlu0 %v499
        %v501 = vpop.xlane.xlu0 %500
        %v502 = vsub.f32 %v493, %v501
        %v503 = vmul.f32 %v502, 1.442695
        %v504 = vpow.pop %v503
        %v505 = vsel %vm498, %v504, 0.0
        %506 = vadd.xlane.f32.xlu0 %v505
        %v507 = vpop.xlane.xlu0 %506
        %v508 = vrcp.pop %v507
        %v509 = vmul.f32 %v504, %v508
        %v510 = vpack.c.bf16 %v509, %v509
        %v512 = vsel %vm498, %v510, 0
        %vm514 = vcmask 1043456
        %v516 = vsel %vm514, %v451, 0
        %518 = vmatprep.subr.bf16.mxu0 0
        %519 = vmatpush1.bf16.msra.mxu0 %v516
        %520 = vmatprep.subr.bf16.mxu0 0
        %521 = vmatpush1.bf16.msra.mxu0 0
        %522 = vmatprep.subr.bf16.mxu0 0
        %523 = vmatpush1.bf16.msra.mxu0 0
        %524 = vmatprep.subr.bf16.mxu0 0
        %525 = vmatpush1.bf16.msra.mxu0 0
        %526 = vmatprep.subr.bf16.mxu0 0
        %527 = vmatpush1.bf16.msra.mxu0 0
        %528 = vmatprep.subr.bf16.mxu0 0
        %529 = vmatpush1.bf16.msra.mxu0 0
        %530 = vmatprep.subr.bf16.mxu0 0
        %531 = vmatpush1.bf16.msra.mxu0 0
        %532 = vmatprep.subr.bf16.mxu0 0
        %533 = vmatpush1.bf16.msra.mxu0 0
        %534 = vmatprep.subr.bf16.mxu0 0
        %535 = vmatpush1.bf16.msra.mxu0 0
        %536 = vmatprep.subr.bf16.mxu0 0
        %537 = vmatpush1.bf16.msra.mxu0 0
        %538 = vmatprep.subr.bf16.mxu0 0
        %539 = vmatpush1.bf16.msra.mxu0 0
        %540 = vmatprep.subr.bf16.mxu0 0
        %541 = vmatpush1.bf16.msra.mxu0 0
        %542 = vmatprep.subr.bf16.mxu0 0
        %543 = vmatpush1.bf16.msra.mxu0 0
        %544 = vmatprep.subr.bf16.mxu0 0
        %545 = vmatpush1.bf16.msra.mxu0 0
        %546 = vmatprep.subr.bf16.mxu0 0
        %547 = vmatpush1.bf16.msra.mxu0 0
        %548 = vmatprep.subr.bf16.mxu0 0
        %549 = vmatpush1.bf16.msra.mxu0 0
        %550 = vmatprep.mubr.bf16.mxu0 0
        %551 = vmatmul.mubr.bf16.gmra.mrb[0].mxu0 %v512
        %v552 = vpop.f32.mrb[0].mxu0
        %v553 = vadd.f32 0.0, %v552
        %v554 = vpop.f32.mrb[0].mxu0
        %v555 = vpop.f32.mrb[0].mxu0
        %v556 = vpop.f32.mrb[0].mxu0
        %557 = vdwg.mxu0
        %558 = vst.msk [vmem:[#allocation2] sm:$0xff] %vm316, %v553
        %560 = vrot.lane.b32.xlu0 %v449, 96
        %v561 = vpop.permute.xlu0 %560
        %563 = vrot.lane.b32.xlu0 %v450, 96
        %v564 = vpop.permute.xlu0 %563
        %v566 = vsel %vm316, %v561, 0
        %v569 = vsel %vm316, %v564, 0
        %571 = vmatprep.subr.bf16.mxu0 0
        %572 = vmatpush1.bf16.xpose.msra.mxu0 %v569
        %573 = vmatprep.subr.bf16.mxu0 0
        %574 = vmatpush1.bf16.xpose.msra.mxu0 0
        %575 = vmatprep.subr.bf16.mxu0 0
        %576 = vmatpush1.bf16.xpose.msra.mxu0 0
        %577 = vmatprep.subr.bf16.mxu0 0
        %578 = vmatpush1.bf16.xpose.msra.mxu0 0
        %579 = vmatprep.subr.bf16.mxu0 0
        %580 = vmatpush1.bf16.xpose.msra.mxu0 0
        %581 = vmatprep.subr.bf16.mxu0 0
        %582 = vmatpush1.bf16.xpose.msra.mxu0 0
        %583 = vmatprep.subr.bf16.mxu0 0
        %584 = vmatpush1.bf16.xpose.msra.mxu0 0
        %585 = vmatprep.subr.bf16.mxu0 0
        %586 = vmatpush1.bf16.xpose.msra.mxu0 0
        %587 = vmatprep.subr.bf16.mxu0 0
        %588 = vmatpush1.bf16.xpose.msra.mxu0 0
        %589 = vmatprep.subr.bf16.mxu0 0
        %590 = vmatpush1.bf16.xpose.msra.mxu0 0
        %591 = vmatprep.subr.bf16.mxu0 0
        %592 = vmatpush1.bf16.xpose.msra.mxu0 0
        %593 = vmatprep.subr.bf16.mxu0 0
        %594 = vmatpush1.bf16.xpose.msra.mxu0 0
        %595 = vmatprep.subr.bf16.mxu0 0
        %596 = vmatpush1.bf16.xpose.msra.mxu0 0
        %597 = vmatprep.subr.bf16.mxu0 0
        %598 = vmatpush1.bf16.xpose.msra.mxu0 0
        %599 = vmatprep.subr.bf16.mxu0 0
        %600 = vmatpush1.bf16.xpose.msra.mxu0 0
        %601 = vmatprep.subr.bf16.mxu0 0
        %602 = vmatpush1.bf16.xpose.msra.mxu0 0
        %603 = vmatprep.mubr.bf16.mxu0 0
        %604 = vmatmul.mubr.bf16.gmra.mrb[0].mxu0 %v566
        %v605 = vpop.f32.mrb[0].mxu0
        %v606 = vadd.f32 %v448, %v605
        %v607 = vpop.f32.mrb[0].mxu0
        %v608 = vpop.f32.mrb[0].mxu0
        %v609 = vpop.f32.mrb[0].mxu0
        %610 = vdwg.mxu0
        %v611 = vsel %vm498, %v606, -inf
        %612 = vmax.xlane.f32.xlu0 %v611
        %v613 = vpop.xlane.xlu0 %612
        %v614 = vsub.f32 %v606, %v613
        %v615 = vmul.f32 %v614, 1.442695
        %v616 = vpow.pop %v615
        %v617 = vsel %vm498, %v616, 0.0
        %618 = vadd.xlane.f32.xlu0 %v617
        %v619 = vpop.xlane.xlu0 %618
        %v620 = vrcp.pop %v619
        %v621 = vmul.f32 %v616, %v620
        %v622 = vpack.c.bf16 %v621, %v621
        %624 = vrot.lane.b32.xlu0 %v451, 96
        %v625 = vpop.permute.xlu0 %624
        %v627 = vsel %vm498, %v622, 0
        %v630 = vsel %vm514, %v625, 0
        %632 = vmatprep.subr.bf16.mxu0 0
        %633 = vmatpush1.bf16.msra.mxu0 %v630
        %634 = vmatprep.subr.bf16.mxu0 0
        %635 = vmatpush1.bf16.msra.mxu0 0
        %636 = vmatprep.subr.bf16.mxu0 0
        %637 = vmatpush1.bf16.msra.mxu0 0
        %638 = vmatprep.subr.bf16.mxu0 0
        %639 = vmatpush1.bf16.msra.mxu0 0
        %640 = vmatprep.subr.bf16.mxu0 0
        %641 = vmatpush1.bf16.msra.mxu0 0
        %642 = vmatprep.subr.bf16.mxu0 0
        %643 = vmatpush1.bf16.msra.mxu0 0
        %644 = vmatprep.subr.bf16.mxu0 0
        %645 = vmatpush1.bf16.msra.mxu0 0
        %646 = vmatprep.subr.bf16.mxu0 0
        %647 = vmatpush1.bf16.msra.mxu0 0
        %648 = vmatprep.subr.bf16.mxu0 0
        %649 = vmatpush1.bf16.msra.mxu0 0
        %650 = vmatprep.subr.bf16.mxu0 0
        %651 = vmatpush1.bf16.msra.mxu0 0
        %652 = vmatprep.subr.bf16.mxu0 0
        %653 = vmatpush1.bf16.msra.mxu0 0
        %654 = vmatprep.subr.bf16.mxu0 0
        %655 = vmatpush1.bf16.msra.mxu0 0
        %656 = vmatprep.subr.bf16.mxu0 0
        %657 = vmatpush1.bf16.msra.mxu0 0
        %658 = vmatprep.subr.bf16.mxu0 0
        %659 = vmatpush1.bf16.msra.mxu0 0
        %660 = vmatprep.subr.bf16.mxu0 0
        %661 = vmatpush1.bf16.msra.mxu0 0
        %662 = vmatprep.subr.bf16.mxu0 0
        %663 = vmatpush1.bf16.msra.mxu0 0
        %664 = vmatprep.mubr.bf16.mxu0 0
        %665 = vmatmul.mubr.bf16.gmra.mrb[0].mxu0 %v627
        %v666 = vpop.f32.mrb[0].mxu0
        %v667 = vadd.f32 0.0, %v666
        %v668 = vpop.f32.mrb[0].mxu0
        %v669 = vpop.f32.mrb[0].mxu0
        %v670 = vpop.f32.mrb[0].mxu0
        %671 = vdwg.mxu0
        %673 = vrot.lane.b32.xlu0 %v667, 32
        %v674 = vpop.permute.xlu0 %673
        %vm676 = vcmask 523520
        %677 = vst.msk [vmem:[#allocation2] sm:$0xff] %vm676, %v674
        %678 = vrot.lane.b32.xlu0 %v449, 64
        %v679 = vpop.permute.xlu0 %678
        %680 = vrot.lane.b32.xlu0 %v450, 64
        %v681 = vpop.permute.xlu0 %680
        %v683 = vsel %vm316, %v679, 0
        %v686 = vsel %vm316, %v681, 0
        %688 = vmatprep.subr.bf16.mxu0 0
        %689 = vmatpush1.bf16.xpose.msra.mxu0 %v686
        %690 = vmatprep.subr.bf16.mxu0 0
        %691 = vmatpush1.bf16.xpose.msra.mxu0 0
        %692 = vmatprep.subr.bf16.mxu0 0
        %693 = vmatpush1.bf16.xpose.msra.mxu0 0
        %694 = vmatprep.subr.bf16.mxu0 0
        %695 = vmatpush1.bf16.xpose.msra.mxu0 0
        %696 = vmatprep.subr.bf16.mxu0 0
        %697 = vmatpush1.bf16.xpose.msra.mxu0 0
        %698 = vmatprep.subr.bf16.mxu0 0
        %699 = vmatpush1.bf16.xpose.msra.mxu0 0
        %700 = vmatprep.subr.bf16.mxu0 0
        %701 = vmatpush1.bf16.xpose.msra.mxu0 0
        %702 = vmatprep.subr.bf16.mxu0 0
        %703 = vmatpush1.bf16.xpose.msra.mxu0 0
        %704 = vmatprep.subr.bf16.mxu0 0
        %705 = vmatpush1.bf16.xpose.msra.mxu0 0
        %706 = vmatprep.subr.bf16.mxu0 0
        %707 = vmatpush1.bf16.xpose.msra.mxu0 0
        %708 = vmatprep.subr.bf16.mxu0 0
        %709 = vmatpush1.bf16.xpose.msra.mxu0 0
        %710 = vmatprep.subr.bf16.mxu0 0
        %711 = vmatpush1.bf16.xpose.msra.mxu0 0
        %712 = vmatprep.subr.bf16.mxu0 0
        %713 = vmatpush1.bf16.xpose.msra.mxu0 0
        %714 = vmatprep.subr.bf16.mxu0 0
        %715 = vmatpush1.bf16.xpose.msra.mxu0 0
        %716 = vmatprep.subr.bf16.mxu0 0
        %717 = vmatpush1.bf16.xpose.msra.mxu0 0
        %718 = vmatprep.subr.bf16.mxu0 0
        %719 = vmatpush1.bf16.xpose.msra.mxu0 0
        %720 = vmatprep.mubr.bf16.mxu0 0
        %721 = vmatmul.mubr.bf16.gmra.mrb[0].mxu0 %v683
        %v722 = vpop.f32.mrb[0].mxu0
        %v723 = vadd.f32 %v448, %v722
        %v724 = vpop.f32.mrb[0].mxu0
        %v725 = vpop.f32.mrb[0].mxu0
        %v726 = vpop.f32.mrb[0].mxu0
        %727 = vdwg.mxu0
        %v728 = vsel %vm498, %v723, -inf
        %729 = vmax.xlane.f32.xlu0 %v728
        %v730 = vpop.xlane.xlu0 %729
        %v731 = vsub.f32 %v723, %v730
        %v732 = vmul.f32 %v731, 1.442695
        %v733 = vpow.pop %v732
        %v734 = vsel %vm498, %v733, 0.0
        %735 = vadd.xlane.f32.xlu0 %v734
        %v736 = vpop.xlane.xlu0 %735
        %v737 = vrcp.pop %v736
        %v738 = vmul.f32 %v733, %v737
        %v739 = vpack.c.bf16 %v738, %v738
        %740 = vrot.lane.b32.xlu0 %v451, 64
        %v741 = vpop.permute.xlu0 %740
        %v743 = vsel %vm498, %v739, 0
        %v746 = vsel %vm514, %v741, 0
        %748 = vmatprep.subr.bf16.mxu0 0
        %749 = vmatpush1.bf16.msra.mxu0 %v746
        %750 = vmatprep.subr.bf16.mxu0 0
        %751 = vmatpush1.bf16.msra.mxu0 0
        %752 = vmatprep.subr.bf16.mxu0 0
        %753 = vmatpush1.bf16.msra.mxu0 0
        %754 = vmatprep.subr.bf16.mxu0 0
        %755 = vmatpush1.bf16.msra.mxu0 0
        %756 = vmatprep.subr.bf16.mxu0 0
        %757 = vmatpush1.bf16.msra.mxu0 0
        %758 = vmatprep.subr.bf16.mxu0 0
        %759 = vmatpush1.bf16.msra.mxu0 0
        %760 = vmatprep.subr.bf16.mxu0 0
        %761 = vmatpush1.bf16.msra.mxu0 0
        %762 = vmatprep.subr.bf16.mxu0 0
        %763 = vmatpush1.bf16.msra.mxu0 0
        %764 = vmatprep.subr.bf16.mxu0 0
        %765 = vmatpush1.bf16.msra.mxu0 0
        %766 = vmatprep.subr.bf16.mxu0 0
        %767 = vmatpush1.bf16.msra.mxu0 0
        %768 = vmatprep.subr.bf16.mxu0 0
        %769 = vmatpush1.bf16.msra.mxu0 0
        %770 = vmatprep.subr.bf16.mxu0 0
        %771 = vmatpush1.bf16.msra.mxu0 0
        %772 = vmatprep.subr.bf16.mxu0 0
        %773 = vmatpush1.bf16.msra.mxu0 0
        %774 = vmatprep.subr.bf16.mxu0 0
        %775 = vmatpush1.bf16.msra.mxu0 0
        %776 = vmatprep.subr.bf16.mxu0 0
        %777 = vmatpush1.bf16.msra.mxu0 0
        %778 = vmatprep.subr.bf16.mxu0 0
        %779 = vmatpush1.bf16.msra.mxu0 0
        %780 = vmatprep.mubr.bf16.mxu0 0
        %781 = vmatmul.mubr.bf16.gmra.mrb[0].mxu0 %v743
        %v782 = vpop.f32.mrb[0].mxu0
        %v783 = vadd.f32 0.0, %v782
        %v784 = vpop.f32.mrb[0].mxu0
        %v785 = vpop.f32.mrb[0].mxu0
        %v786 = vpop.f32.mrb[0].mxu0
        %787 = vdwg.mxu0
        %789 = vrot.lane.b32.xlu0 %v783, 64
        %v790 = vpop.permute.xlu0 %789
        %vm792 = vcmask 785920
        %793 = vst.msk [vmem:[#allocation2] sm:$0xff] %vm792, %v790
        %794 = vrot.lane.b32.xlu0 %v449, 32
        %v795 = vpop.permute.xlu0 %794
        %796 = vrot.lane.b32.xlu0 %v450, 32
        %v797 = vpop.permute.xlu0 %796
        %v799 = vsel %vm316, %v795, 0
        %v802 = vsel %vm316, %v797, 0
        %804 = vmatprep.subr.bf16.mxu0 0
        %805 = vmatpush1.bf16.xpose.msra.mxu0 %v802
        %806 = vmatprep.subr.bf16.mxu0 0
        %807 = vmatpush1.bf16.xpose.msra.mxu0 0
        %808 = vmatprep.subr.bf16.mxu0 0
        %809 = vmatpush1.bf16.xpose.msra.mxu0 0
        %810 = vmatprep.subr.bf16.mxu0 0
        %811 = vmatpush1.bf16.xpose.msra.mxu0 0
        %812 = vmatprep.subr.bf16.mxu0 0
        %813 = vmatpush1.bf16.xpose.msra.mxu0 0
        %814 = vmatprep.subr.bf16.mxu0 0
        %815 = vmatpush1.bf16.xpose.msra.mxu0 0
        %816 = vmatprep.subr.bf16.mxu0 0
        %817 = vmatpush1.bf16.xpose.msra.mxu0 0
        %818 = vmatprep.subr.bf16.mxu0 0
        %819 = vmatpush1.bf16.xpose.msra.mxu0 0
        %820 = vmatprep.subr.bf16.mxu0 0
        %821 = vmatpush1.bf16.xpose.msra.mxu0 0
        %822 = vmatprep.subr.bf16.mxu0 0
        %823 = vmatpush1.bf16.xpose.msra.mxu0 0
        %824 = vmatprep.subr.bf16.mxu0 0
        %825 = vmatpush1.bf16.xpose.msra.mxu0 0
        %826 = vmatprep.subr.bf16.mxu0 0
        %827 = vmatpush1.bf16.xpose.msra.mxu0 0
        %828 = vmatprep.subr.bf16.mxu0 0
        %829 = vmatpush1.bf16.xpose.msra.mxu0 0
        %830 = vmatprep.subr.bf16.mxu0 0
        %831 = vmatpush1.bf16.xpose.msra.mxu0 0
        %832 = vmatprep.subr.bf16.mxu0 0
        %833 = vmatpush1.bf16.xpose.msra.mxu0 0
        %834 = vmatprep.subr.bf16.mxu0 0
        %835 = vmatpush1.bf16.xpose.msra.mxu0 0
        %836 = vmatprep.mubr.bf16.mxu0 0
        %837 = vmatmul.mubr.bf16.gmra.mrb[0].mxu0 %v799
        %v838 = vpop.f32.mrb[0].mxu0
        %v839 = vadd.f32 %v448, %v838
        %v840 = vpop.f32.mrb[0].mxu0
        %v841 = vpop.f32.mrb[0].mxu0
        %v842 = vpop.f32.mrb[0].mxu0
        %843 = vdwg.mxu0
        %v844 = vsel %vm498, %v839, -inf
        %845 = vmax.xlane.f32.xlu0 %v844
        %v846 = vpop.xlane.xlu0 %845
        %v847 = vsub.f32 %v839, %v846
        %v848 = vmul.f32 %v847, 1.442695
        %v849 = vpow.pop %v848
        %v850 = vsel %vm498, %v849, 0.0
        %851 = vadd.xlane.f32.xlu0 %v850
        %v852 = vpop.xlane.xlu0 %851
        %v853 = vrcp.pop %v852
        %v854 = vmul.f32 %v849, %v853
        %v855 = vpack.c.bf16 %v854, %v854
        %856 = vrot.lane.b32.xlu0 %v451, 32
        %v857 = vpop.permute.xlu0 %856
        %v859 = vsel %vm498, %v855, 0
        %v862 = vsel %vm514, %v857, 0
        %864 = vmatprep.subr.bf16.mxu0 0
        %865 = vmatpush1.bf16.msra.mxu0 %v862
        %866 = vmatprep.subr.bf16.mxu0 0
        %867 = vmatpush1.bf16.msra.mxu0 0
        %868 = vmatprep.subr.bf16.mxu0 0
        %869 = vmatpush1.bf16.msra.mxu0 0
        %870 = vmatprep.subr.bf16.mxu0 0
        %871 = vmatpush1.bf16.msra.mxu0 0
        %872 = vmatprep.subr.bf16.mxu0 0
        %873 = vmatpush1.bf16.msra.mxu0 0
        %874 = vmatprep.subr.bf16.mxu0 0
        %875 = vmatpush1.bf16.msra.mxu0 0
        %876 = vmatprep.subr.bf16.mxu0 0
        %877 = vmatpush1.bf16.msra.mxu0 0
        %878 = vmatprep.subr.bf16.mxu0 0
        %879 = vmatpush1.bf16.msra.mxu0 0
        %880 = vmatprep.subr.bf16.mxu0 0
        %881 = vmatpush1.bf16.msra.mxu0 0
        %882 = vmatprep.subr.bf16.mxu0 0
        %883 = vmatpush1.bf16.msra.mxu0 0
        %884 = vmatprep.subr.bf16.mxu0 0
        %885 = vmatpush1.bf16.msra.mxu0 0
        %886 = vmatprep.subr.bf16.mxu0 0
        %887 = vmatpush1.bf16.msra.mxu0 0
        %888 = vmatprep.subr.bf16.mxu0 0
        %889 = vmatpush1.bf16.msra.mxu0 0
        %890 = vmatprep.subr.bf16.mxu0 0
        %891 = vmatpush1.bf16.msra.mxu0 0
        %892 = vmatprep.subr.bf16.mxu0 0
        %893 = vmatpush1.bf16.msra.mxu0 0
        %894 = vmatprep.subr.bf16.mxu0 0
        %895 = vmatpush1.bf16.msra.mxu0 0
        %896 = vmatprep.mubr.bf16.mxu0 0
        %897 = vmatmul.mubr.bf16.gmra.mrb[0].mxu0 %v859
        %v898 = vpop.f32.mrb[0].mxu0
        %v899 = vadd.f32 0.0, %v898
        %v900 = vpop.f32.mrb[0].mxu0
        %v901 = vpop.f32.mrb[0].mxu0
        %v902 = vpop.f32.mrb[0].mxu0
        %903 = vdwg.mxu0
        %905 = vrot.lane.b32.xlu0 %v899, 96
        %v906 = vpop.permute.xlu0 %905
        %vm908 = vcmask 1048320
        %909 = vst.msk [vmem:[#allocation2] sm:$0xff] %vm908, %v906
        %v910 = vpack.c.bf16 %v357, %v357
        %v911 = vpack.c.bf16 %v398, %v398
        %v912 = vpack.c.bf16 %v439, %v439
        %v914 = vsel %vm316, %v910, 0
        %v917 = vsel %vm316, %v911, 0
        %919 = vmatprep.subr.bf16.mxu0 0
        %920 = vmatpush1.bf16.xpose.msra.mxu0 %v917
        %921 = vmatprep.subr.bf16.mxu0 0
        %922 = vmatpush1.bf16.xpose.msra.mxu0 0
        %923 = vmatprep.subr.bf16.mxu0 0
        %924 = vmatpush1.bf16.xpose.msra.mxu0 0
        %925 = vmatprep.subr.bf16.mxu0 0
        %926 = vmatpush1.bf16.xpose.msra.mxu0 0
        %927 = vmatprep.subr.bf16.mxu0 0
        %928 = vmatpush1.bf16.xpose.msra.mxu0 0
        %929 = vmatprep.subr.bf16.mxu0 0
        %930 = vmatpush1.bf16.xpose.msra.mxu0 0
        %931 = vmatprep.subr.bf16.mxu0 0
        %932 = vmatpush1.bf16.xpose.msra.mxu0 0
        %933 = vmatprep.subr.bf16.mxu0 0
        %934 = vmatpush1.bf16.xpose.msra.mxu0 0
        %935 = vmatprep.subr.bf16.mxu0 0
        %936 = vmatpush1.bf16.xpose.msra.mxu0 0
        %937 = vmatprep.subr.bf16.mxu0 0
        %938 = vmatpush1.bf16.xpose.msra.mxu0 0
        %939 = vmatprep.subr.bf16.mxu0 0
        %940 = vmatpush1.bf16.xpose.msra.mxu0 0
        %941 = vmatprep.subr.bf16.mxu0 0
        %942 = vmatpush1.bf16.xpose.msra.mxu0 0
        %943 = vmatprep.subr.bf16.mxu0 0
        %944 = vmatpush1.bf16.xpose.msra.mxu0 0
        %945 = vmatprep.subr.bf16.mxu0 0
        %946 = vmatpush1.bf16.xpose.msra.mxu0 0
        %947 = vmatprep.subr.bf16.mxu0 0
        %948 = vmatpush1.bf16.xpose.msra.mxu0 0
        %949 = vmatprep.subr.bf16.mxu0 0
        %950 = vmatpush1.bf16.xpose.msra.mxu0 0
        %951 = vmatprep.mubr.bf16.mxu0 0
        %952 = vmatmul.mubr.bf16.gmra.mrb[0].mxu0 %v914
        %v953 = vpop.f32.mrb[0].mxu0
        %v954 = vadd.f32 %v448, %v953
        %v955 = vpop.f32.mrb[0].mxu0
        %v956 = vpop.f32.mrb[0].mxu0
        %v957 = vpop.f32.mrb[0].mxu0
        %958 = vdwg.mxu0
        %v959 = vsel %vm498, %v954, -inf
        %960 = vmax.xlane.f32.xlu0 %v959
        %v961 = vpop.xlane.xlu0 %960
        %v962 = vsub.f32 %v954, %v961
        %v963 = vmul.f32 %v962, 1.442695
        %v964 = vpow.pop %v963
        %v965 = vsel %vm498, %v964, 0.0
        %966 = vadd.xlane.f32.xlu0 %v965
        %v967 = vpop.xlane.xlu0 %966
        %v968 = vrcp.pop %v967
        %v969 = vmul.f32 %v964, %v968
        %v970 = vpack.c.bf16 %v969, %v969
        %v972 = vsel %vm498, %v970, 0
        %v975 = vsel %vm514, %v912, 0
        %977 = vmatprep.subr.bf16.mxu0 0
        %978 = vmatpush1.bf16.msra.mxu0 %v975
        %979 = vmatprep.subr.bf16.mxu0 0
        %980 = vmatpush1.bf16.msra.mxu0 0
        %981 = vmatprep.subr.bf16.mxu0 0
        %982 = vmatpush1.bf16.msra.mxu0 0
        %983 = vmatprep.subr.bf16.mxu0 0
        %984 = vmatpush1.bf16.msra.mxu0 0
        %985 = vmatprep.subr.bf16.mxu0 0
        %986 = vmatpush1.bf16.msra.mxu0 0
        %987 = vmatprep.subr.bf16.mxu0 0
        %988 = vmatpush1.bf16.msra.mxu0 0
        %989 = vmatprep.subr.bf16.mxu0 0
        %990 = vmatpush1.bf16.msra.mxu0 0
        %991 = vmatprep.subr.bf16.mxu0 0
        %992 = vmatpush1.bf16.msra.mxu0 0
        %993 = vmatprep.subr.bf16.mxu0 0
        %994 = vmatpush1.bf16.msra.mxu0 0
        %995 = vmatprep.subr.bf16.mxu0 0
        %996 = vmatpush1.bf16.msra.mxu0 0
        %997 = vmatprep.subr.bf16.mxu0 0
        %998 = vmatpush1.bf16.msra.mxu0 0
        %999 = vmatprep.subr.bf16.mxu0 0
        %1000 = vmatpush1.bf16.msra.mxu0 0
        %1001 = vmatprep.subr.bf16.mxu0 0
        %1002 = vmatpush1.bf16.msra.mxu0 0
        %1003 = vmatprep.subr.bf16.mxu0 0
        %1004 = vmatpush1.bf16.msra.mxu0 0
        %1005 = vmatprep.subr.bf16.mxu0 0
        %1006 = vmatpush1.bf16.msra.mxu0 0
        %1007 = vmatprep.subr.bf16.mxu0 0
        %1008 = vmatpush1.bf16.msra.mxu0 0
        %1009 = vmatprep.mubr.bf16.mxu0 0
        %1010 = vmatmul.mubr.bf16.gmra.mrb[0].mxu0 %v972
        %v1011 = vpop.f32.mrb[0].mxu0
        %v1012 = vadd.f32 0.0, %v1011
        %v1013 = vpop.f32.mrb[0].mxu0
        %v1014 = vpop.f32.mrb[0].mxu0
        %v1015 = vpop.f32.mrb[0].mxu0
        %1016 = vdwg.mxu0
        %1017 = vst.msk [vmem:[#allocation2 + $0x8] sm:$0xff] %vm316, %v1012
        %1019 = vrot.lane.b32.xlu0 %v910, 96
        %v1020 = vpop.permute.xlu0 %1019
        %1022 = vrot.lane.b32.xlu0 %v911, 96
        %v1023 = vpop.permute.xlu0 %1022
        %v1025 = vsel %vm316, %v1020, 0
        %v1028 = vsel %vm316, %v1023, 0
        %1030 = vmatprep.subr.bf16.mxu0 0
        %1031 = vmatpush1.bf16.xpose.msra.mxu0 %v1028
        %1032 = vmatprep.subr.bf16.mxu0 0
        %1033 = vmatpush1.bf16.xpose.msra.mxu0 0
        %1034 = vmatprep.subr.bf16.mxu0 0
        %1035 = vmatpush1.bf16.xpose.msra.mxu0 0
        %1036 = vmatprep.subr.bf16.mxu0 0
        %1037 = vmatpush1.bf16.xpose.msra.mxu0 0
        %1038 = vmatprep.subr.bf16.mxu0 0
        %1039 = vmatpush1.bf16.xpose.msra.mxu0 0
        %1040 = vmatprep.subr.bf16.mxu0 0
        %1041 = vmatpush1.bf16.xpose.msra.mxu0 0
        %1042 = vmatprep.subr.bf16.mxu0 0
        %1043 = vmatpush1.bf16.xpose.msra.mxu0 0
        %1044 = vmatprep.subr.bf16.mxu0 0
        %1045 = vmatpush1.bf16.xpose.msra.mxu0 0
        %1046 = vmatprep.subr.bf16.mxu0 0
        %1047 = vmatpush1.bf16.xpose.msra.mxu0 0
        %1048 = vmatprep.subr.bf16.mxu0 0
        %1049 = vmatpush1.bf16.xpose.msra.mxu0 0
        %1050 = vmatprep.subr.bf16.mxu0 0
        %1051 = vmatpush1.bf16.xpose.msra.mxu0 0
        %1052 = vmatprep.subr.bf16.mxu0 0
        %1053 = vmatpush1.bf16.xpose.msra.mxu0 0
        %1054 = vmatprep.subr.bf16.mxu0 0
        %1055 = vmatpush1.bf16.xpose.msra.mxu0 0
        %1056 = vmatprep.subr.bf16.mxu0 0
        %1057 = vmatpush1.bf16.xpose.msra.mxu0 0
        %1058 = vmatprep.subr.bf16.mxu0 0
        %1059 = vmatpush1.bf16.xpose.msra.mxu0 0
        %1060 = vmatprep.subr.bf16.mxu0 0
        %1061 = vmatpush1.bf16.xpose.msra.mxu0 0
        %1062 = vmatprep.mubr.bf16.mxu0 0
        %1063 = vmatmul.mubr.bf16.gmra.mrb[0].mxu0 %v1025
        %v1064 = vpop.f32.mrb[0].mxu0
        %v1065 = vadd.f32 %v448, %v1064
        %v1066 = vpop.f32.mrb[0].mxu0
        %v1067 = vpop.f32.mrb[0].mxu0
        %v1068 = vpop.f32.mrb[0].mxu0
        %1069 = vdwg.mxu0
        %v1070 = vsel %vm498, %v1065, -inf
        %1071 = vmax.xlane.f32.xlu0 %v1070
        %v1072 = vpop.xlane.xlu0 %1071
        %v1073 = vsub.f32 %v1065, %v1072
        %v1074 = vmul.f32 %v1073, 1.442695
        %v1075 = vpow.pop %v1074
        %v1076 = vsel %vm498, %v1075, 0.0
        %1077 = vadd.xlane.f32.xlu0 %v1076
        %v1078 = vpop.xlane.xlu0 %1077
        %v1079 = vrcp.pop %v1078
        %v1080 = vmul.f32 %v1075, %v1079
        %v1081 = vpack.c.bf16 %v1080, %v1080
        %1083 = vrot.lane.b32.xlu0 %v912, 96
        %v1084 = vpop.permute.xlu0 %1083
        %v1086 = vsel %vm498, %v1081, 0
        %v1089 = vsel %vm514, %v1084, 0
        %1091 = vmatprep.subr.bf16.mxu0 0
        %1092 = vmatpush1.bf16.msra.mxu0 %v1089
        %1093 = vmatprep.subr.bf16.mxu0 0
        %1094 = vmatpush1.bf16.msra.mxu0 0
        %1095 = vmatprep.subr.bf16.mxu0 0
        %1096 = vmatpush1.bf16.msra.mxu0 0
        %1097 = vmatprep.subr.bf16.mxu0 0
        %1098 = vmatpush1.bf16.msra.mxu0 0
        %1099 = vmatprep.subr.bf16.mxu0 0
        %1100 = vmatpush1.bf16.msra.mxu0 0
        %1101 = vmatprep.subr.bf16.mxu0 0
        %1102 = vmatpush1.bf16.msra.mxu0 0
        %1103 = vmatprep.subr.bf16.mxu0 0
        %1104 = vmatpush1.bf16.msra.mxu0 0
        %1105 = vmatprep.subr.bf16.mxu0 0
        %1106 = vmatpush1.bf16.msra.mxu0 0
        %1107 = vmatprep.subr.bf16.mxu0 0
        %1108 = vmatpush1.bf16.msra.mxu0 0
        %1109 = vmatprep.subr.bf16.mxu0 0
        %1110 = vmatpush1.bf16.msra.mxu0 0
        %1111 = vmatprep.subr.bf16.mxu0 0
        %1112 = vmatpush1.bf16.msra.mxu0 0
        %1113 = vmatprep.subr.bf16.mxu0 0
        %1114 = vmatpush1.bf16.msra.mxu0 0
        %1115 = vmatprep.subr.bf16.mxu0 0
        %1116 = vmatpush1.bf16.msra.mxu0 0
        %1117 = vmatprep.subr.bf16.mxu0 0
        %1118 = vmatpush1.bf16.msra.mxu0 0
        %1119 = vmatprep.subr.bf16.mxu0 0
        %1120 = vmatpush1.bf16.msra.mxu0 0
        %1121 = vmatprep.subr.bf16.mxu0 0
        %1122 = vmatpush1.bf16.msra.mxu0 0
        %1123 = vmatprep.mubr.bf16.mxu0 0
        %1124 = vmatmul.mubr.bf16.gmra.mrb[0].mxu0 %v1086
        %v1125 = vpop.f32.mrb[0].mxu0
        %v1126 = vadd.f32 0.0, %v1125
        %v1127 = vpop.f32.mrb[0].mxu0
        %v1128 = vpop.f32.mrb[0].mxu0
        %v1129 = vpop.f32.mrb[0].mxu0
        %1130 = vdwg.mxu0
        %1132 = vrot.lane.b32.xlu0 %v1126, 32
        %v1133 = vpop.permute.xlu0 %1132
        %1135 = vst.msk [vmem:[#allocation2 + $0x8] sm:$0xff] %vm676, %v1133
        %1136 = vrot.lane.b32.xlu0 %v910, 64
        %v1137 = vpop.permute.xlu0 %1136
        %1138 = vrot.lane.b32.xlu0 %v911, 64
        %v1139 = vpop.permute.xlu0 %1138
        %v1141 = vsel %vm316, %v1137, 0
        %v1144 = vsel %vm316, %v1139, 0
        %1146 = vmatprep.subr.bf16.mxu0 0
        %1147 = vmatpush1.bf16.xpose.msra.mxu0 %v1144
        %1148 = vmatprep.subr.bf16.mxu0 0
        %1149 = vmatpush1.bf16.xpose.msra.mxu0 0
        %1150 = vmatprep.subr.bf16.mxu0 0
        %1151 = vmatpush1.bf16.xpose.msra.mxu0 0
        %1152 = vmatprep.subr.bf16.mxu0 0
        %1153 = vmatpush1.bf16.xpose.msra.mxu0 0
        %1154 = vmatprep.subr.bf16.mxu0 0
        %1155 = vmatpush1.bf16.xpose.msra.mxu0 0
        %1156 = vmatprep.subr.bf16.mxu0 0
        %1157 = vmatpush1.bf16.xpose.msra.mxu0 0
        %1158 = vmatprep.subr.bf16.mxu0 0
        %1159 = vmatpush1.bf16.xpose.msra.mxu0 0
        %1160 = vmatprep.subr.bf16.mxu0 0
        %1161 = vmatpush1.bf16.xpose.msra.mxu0 0
        %1162 = vmatprep.subr.bf16.mxu0 0
        %1163 = vmatpush1.bf16.xpose.msra.mxu0 0
        %1164 = vmatprep.subr.bf16.mxu0 0
        %1165 = vmatpush1.bf16.xpose.msra.mxu0 0
        %1166 = vmatprep.subr.bf16.mxu0 0
        %1167 = vmatpush1.bf16.xpose.msra.mxu0 0
        %1168 = vmatprep.subr.bf16.mxu0 0
        %1169 = vmatpush1.bf16.xpose.msra.mxu0 0
        %1170 = vmatprep.subr.bf16.mxu0 0
        %1171 = vmatpush1.bf16.xpose.msra.mxu0 0
        %1172 = vmatprep.subr.bf16.mxu0 0
        %1173 = vmatpush1.bf16.xpose.msra.mxu0 0
        %1174 = vmatprep.subr.bf16.mxu0 0
        %1175 = vmatpush1.bf16.xpose.msra.mxu0 0
        %1176 = vmatprep.subr.bf16.mxu0 0
        %1177 = vmatpush1.bf16.xpose.msra.mxu0 0
        %1178 = vmatprep.mubr.bf16.mxu0 0
        %1179 = vmatmul.mubr.bf16.gmra.mrb[0].mxu0 %v1141
        %v1180 = vpop.f32.mrb[0].mxu0
        %v1181 = vadd.f32 %v448, %v1180
        %v1182 = vpop.f32.mrb[0].mxu0
        %v1183 = vpop.f32.mrb[0].mxu0
        %v1184 = vpop.f32.mrb[0].mxu0
        %1185 = vdwg.mxu0
        %v1186 = vsel %vm498, %v1181, -inf
        %1187 = vmax.xlane.f32.xlu0 %v1186
        %v1188 = vpop.xlane.xlu0 %1187
        %v1189 = vsub.f32 %v1181, %v1188
        %v1190 = vmul.f32 %v1189, 1.442695
        %v1191 = vpow.pop %v1190
        %v1192 = vsel %vm498, %v1191, 0.0
        %1193 = vadd.xlane.f32.xlu0 %v1192
        %v1194 = vpop.xlane.xlu0 %1193
        %v1195 = vrcp.pop %v1194
        %v1196 = vmul.f32 %v1191, %v1195
        %v1197 = vpack.c.bf16 %v1196, %v1196
        %1198 = vrot.lane.b32.xlu0 %v912, 64
        %v1199 = vpop.permute.xlu0 %1198
        %v1201 = vsel %vm498, %v1197, 0
        %v1204 = vsel %vm514, %v1199, 0
        %1206 = vmatprep.subr.bf16.mxu0 0
        %1207 = vmatpush1.bf16.msra.mxu0 %v1204
        %1208 = vmatprep.subr.bf16.mxu0 0
        %1209 = vmatpush1.bf16.msra.mxu0 0
        %1210 = vmatprep.subr.bf16.mxu0 0
        %1211 = vmatpush1.bf16.msra.mxu0 0
        %1212 = vmatprep.subr.bf16.mxu0 0
        %1213 = vmatpush1.bf16.msra.mxu0 0
        %1214 = vmatprep.subr.bf16.mxu0 0
        %1215 = vmatpush1.bf16.msra.mxu0 0
        %1216 = vmatprep.subr.bf16.mxu0 0
        %1217 = vmatpush1.bf16.msra.mxu0 0
        %1218 = vmatprep.subr.bf16.mxu0 0
        %1219 = vmatpush1.bf16.msra.mxu0 0
        %1220 = vmatprep.subr.bf16.mxu0 0
        %1221 = vmatpush1.bf16.msra.mxu0 0
        %1222 = vmatprep.subr.bf16.mxu0 0
        %1223 = vmatpush1.bf16.msra.mxu0 0
        %1224 = vmatprep.subr.bf16.mxu0 0
        %1225 = vmatpush1.bf16.msra.mxu0 0
        %1226 = vmatprep.subr.bf16.mxu0 0
        %1227 = vmatpush1.bf16.msra.mxu0 0
        %1228 = vmatprep.subr.bf16.mxu0 0
        %1229 = vmatpush1.bf16.msra.mxu0 0
        %1230 = vmatprep.subr.bf16.mxu0 0
        %1231 = vmatpush1.bf16.msra.mxu0 0
        %1232 = vmatprep.subr.bf16.mxu0 0
        %1233 = vmatpush1.bf16.msra.mxu0 0
        %1234 = vmatprep.subr.bf16.mxu0 0
        %1235 = vmatpush1.bf16.msra.mxu0 0
        %1236 = vmatprep.subr.bf16.mxu0 0
        %1237 = vmatpush1.bf16.msra.mxu0 0
        %1238 = vmatprep.mubr.bf16.mxu0 0
        %1239 = vmatmul.mubr.bf16.gmra.mrb[0].mxu0 %v1201
        %v1240 = vpop.f32.mrb[0].mxu0
        %v1241 = vadd.f32 0.0, %v1240
        %v1242 = vpop.f32.mrb[0].mxu0
        %v1243 = vpop.f32.mrb[0].mxu0
        %v1244 = vpop.f32.mrb[0].mxu0
        %1245 = vdwg.mxu0
        %1247 = vrot.lane.b32.xlu0 %v1241, 64
        %v1248 = vpop.permute.xlu0 %1247
        %1250 = vst.msk [vmem:[#allocation2 + $0x8] sm:$0xff] %vm792, %v1248
        %1251 = vrot.lane.b32.xlu0 %v910, 32
        %v1252 = vpop.permute.xlu0 %1251
        %1253 = vrot.lane.b32.xlu0 %v911, 32
        %v1254 = vpop.permute.xlu0 %1253
        %v1256 = vsel %vm316, %v1252, 0
        %v1259 = vsel %vm316, %v1254, 0
        %1261 = vmatprep.subr.bf16.mxu0 0
        %1262 = vmatpush1.bf16.xpose.msra.mxu0 %v1259
        %1263 = vmatprep.subr.bf16.mxu0 0
        %1264 = vmatpush1.bf16.xpose.msra.mxu0 0
        %1265 = vmatprep.subr.bf16.mxu0 0
        %1266 = vmatpush1.bf16.xpose.msra.mxu0 0
        %1267 = vmatprep.subr.bf16.mxu0 0
        %1268 = vmatpush1.bf16.xpose.msra.mxu0 0
        %1269 = vmatprep.subr.bf16.mxu0 0
        %1270 = vmatpush1.bf16.xpose.msra.mxu0 0
        %1271 = vmatprep.subr.bf16.mxu0 0
        %1272 = vmatpush1.bf16.xpose.msra.mxu0 0
        %1273 = vmatprep.subr.bf16.mxu0 0
        %1274 = vmatpush1.bf16.xpose.msra.mxu0 0
        %1275 = vmatprep.subr.bf16.mxu0 0
        %1276 = vmatpush1.bf16.xpose.msra.mxu0 0
        %1277 = vmatprep.subr.bf16.mxu0 0
        %1278 = vmatpush1.bf16.xpose.msra.mxu0 0
        %1279 = vmatprep.subr.bf16.mxu0 0
        %1280 = vmatpush1.bf16.xpose.msra.mxu0 0
        %1281 = vmatprep.subr.bf16.mxu0 0
        %1282 = vmatpush1.bf16.xpose.msra.mxu0 0
        %1283 = vmatprep.subr.bf16.mxu0 0
        %1284 = vmatpush1.bf16.xpose.msra.mxu0 0
        %1285 = vmatprep.subr.bf16.mxu0 0
        %1286 = vmatpush1.bf16.xpose.msra.mxu0 0
        %1287 = vmatprep.subr.bf16.mxu0 0
        %1288 = vmatpush1.bf16.xpose.msra.mxu0 0
        %1289 = vmatprep.subr.bf16.mxu0 0
        %1290 = vmatpush1.bf16.xpose.msra.mxu0 0
        %1291 = vmatprep.subr.bf16.mxu0 0
        %1292 = vmatpush1.bf16.xpose.msra.mxu0 0
        %1293 = vmatprep.mubr.bf16.mxu0 0
        %1294 = vmatmul.mubr.bf16.gmra.mrb[0].mxu0 %v1256
        %v1295 = vpop.f32.mrb[0].mxu0
        %v1296 = vadd.f32 %v448, %v1295
        %v1297 = vpop.f32.mrb[0].mxu0
        %v1298 = vpop.f32.mrb[0].mxu0
        %v1299 = vpop.f32.mrb[0].mxu0
        %1300 = vdwg.mxu0
        %v1301 = vsel %vm498, %v1296, -inf
        %1302 = vmax.xlane.f32.xlu0 %v1301
        %v1303 = vpop.xlane.xlu0 %1302
        %v1304 = vsub.f32 %v1296, %v1303
        %v1305 = vmul.f32 %v1304, 1.442695
        %v1306 = vpow.pop %v1305
        %v1307 = vsel %vm498, %v1306, 0.0
        %1308 = vadd.xlane.f32.xlu0 %v1307
        %v1309 = vpop.xlane.xlu0 %1308
        %v1310 = vrcp.pop %v1309
        %v1311 = vmul.f32 %v1306, %v1310
        %v1312 = vpack.c.bf16 %v1311, %v1311
        %1313 = vrot.lane.b32.xlu0 %v912, 32
        %v1314 = vpop.permute.xlu0 %1313
        %v1316 = vsel %vm498, %v1312, 0
        %v1319 = vsel %vm514, %v1314, 0
        %1321 = vmatprep.subr.bf16.mxu0 0
        %1322 = vmatpush1.bf16.msra.mxu0 %v1319
        %1323 = vmatprep.subr.bf16.mxu0 0
        %1324 = vmatpush1.bf16.msra.mxu0 0
        %1325 = vmatprep.subr.bf16.mxu0 0
        %1326 = vmatpush1.bf16.msra.mxu0 0
        %1327 = vmatprep.subr.bf16.mxu0 0
        %1328 = vmatpush1.bf16.msra.mxu0 0
        %1329 = vmatprep.subr.bf16.mxu0 0
        %1330 = vmatpush1.bf16.msra.mxu0 0
        %1331 = vmatprep.subr.bf16.mxu0 0
        %1332 = vmatpush1.bf16.msra.mxu0 0
        %1333 = vmatprep.subr.bf16.mxu0 0
        %1334 = vmatpush1.bf16.msra.mxu0 0
        %1335 = vmatprep.subr.bf16.mxu0 0
        %1336 = vmatpush1.bf16.msra.mxu0 0
        %1337 = vmatprep.subr.bf16.mxu0 0
        %1338 = vmatpush1.bf16.msra.mxu0 0
        %1339 = vmatprep.subr.bf16.mxu0 0
        %1340 = vmatpush1.bf16.msra.mxu0 0
        %1341 = vmatprep.subr.bf16.mxu0 0
        %1342 = vmatpush1.bf16.msra.mxu0 0
        %1343 = vmatprep.subr.bf16.mxu0 0
        %1344 = vmatpush1.bf16.msra.mxu0 0
        %1345 = vmatprep.subr.bf16.mxu0 0
        %1346 = vmatpush1.bf16.msra.mxu0 0
        %1347 = vmatprep.subr.bf16.mxu0 0
        %1348 = vmatpush1.bf16.msra.mxu0 0
        %1349 = vmatprep.subr.bf16.mxu0 0
        %1350 = vmatpush1.bf16.msra.mxu0 0
        %1351 = vmatprep.subr.bf16.mxu0 0
        %1352 = vmatpush1.bf16.msra.mxu0 0
        %1353 = vmatprep.mubr.bf16.mxu0 0
        %1354 = vmatmul.mubr.bf16.gmra.mrb[0].mxu0 %v1316
        %v1355 = vpop.f32.mrb[0].mxu0
        %v1356 = vadd.f32 0.0, %v1355
        %v1357 = vpop.f32.mrb[0].mxu0
        %v1358 = vpop.f32.mrb[0].mxu0
        %v1359 = vpop.f32.mrb[0].mxu0
        %1360 = vdwg.mxu0
        %1362 = vrot.lane.b32.xlu0 %v1356, 96
        %v1363 = vpop.permute.xlu0 %1362
        %1365 = vst.msk [vmem:[#allocation2 + $0x8] sm:$0xff] %vm908, %v1363
        %v1366 = vld [vmem:[#allocation2] sm:$0xff]
        %v1367 = vld [vmem:[#allocation2 + $0x8] sm:$0xff]
        %v1368 = vpack.c.bf16 %v1366, %v1366
        %v1369 = vpack.c.bf16 %v1367, %v1367
        %v1370 = vld [vmem:[#allocation8] sm:$0xff]
        %v1371 = vld [vmem:[#allocation8 + $0x8] sm:$0xff]
        %v1372 = vld [vmem:[#allocation8 + $0x10] sm:$0xff]
        %v1373 = vld [vmem:[#allocation8 + $0x18] sm:$0xff]
        %v1374 = vld [vmem:[%s3] sm:$0x1]
        %v1376 = vlaneseq
        %v1377 = vshrl.u32 %v1376, 7
        %v1378 = vsub.s32 0, %v1377
        %v1379 = vrot.slane %v1374, %v1378
        %v1385 = vunpack.c.l.b16 %v1370
        %v1386 = vunpack.c.h.b16 %v1370
        %v1387 = vunpack.c.l.b16 %v1371
        %v1388 = vunpack.c.h.b16 %v1371
        %v1389 = vunpack.c.l.b16 %v1372
        %v1390 = vunpack.c.h.b16 %v1372
        %v1391 = vunpack.c.l.b16 %v1373
        %v1392 = vunpack.c.h.b16 %v1373
        %v1393 = vpack.c.b16 %v1387, %v1385
        %v1394 = vpack.c.b16 %v1388, %v1386
        %v1395 = vpack.c.b16 %v1391, %v1389
        %v1396 = vpack.c.b16 %v1392, %v1390
        %1401 = vmatprep.subr.bf16.mxu0 %v1394
        %1402 = vmatpush1.bf16.xpose.msra.mxu0 %v1393
        %1403 = vmatprep.subr.bf16.mxu0 %v1396
        %1404 = vmatpush1.bf16.xpose.msra.mxu0 %v1395
        %1405 = vmatprep.subr.bf16.mxu0 0
        %1406 = vmatpush1.bf16.xpose.msra.mxu0 0
        %1407 = vmatprep.subr.bf16.mxu0 0
        %1408 = vmatpush1.bf16.xpose.msra.mxu0 0
        %1409 = vmatprep.subr.bf16.mxu0 0
        %1410 = vmatpush1.bf16.xpose.msra.mxu0 0
        %1411 = vmatprep.subr.bf16.mxu0 0
        %1412 = vmatpush1.bf16.xpose.msra.mxu0 0
        %1413 = vmatprep.subr.bf16.mxu0 0
        %1414 = vmatpush1.bf16.xpose.msra.mxu0 0
        %1415 = vmatprep.subr.bf16.mxu0 0
        %1416 = vmatpush1.bf16.xpose.msra.mxu0 0
        %1417 = vmatprep.subr.bf16.mxu0 0
        %1418 = vmatpush1.bf16.xpose.msra.mxu0 0
        %1419 = vmatprep.subr.bf16.mxu0 0
        %1420 = vmatpush1.bf16.xpose.msra.mxu0 0
        %1421 = vmatprep.subr.bf16.mxu0 0
        %1422 = vmatpush1.bf16.xpose.msra.mxu0 0
        %1423 = vmatprep.subr.bf16.mxu0 0
        %1424 = vmatpush1.bf16.xpose.msra.mxu0 0
        %1425 = vmatprep.subr.bf16.mxu0 0
        %1426 = vmatpush1.bf16.xpose.msra.mxu0 0
        %1427 = vmatprep.subr.bf16.mxu0 0
        %1428 = vmatpush1.bf16.xpose.msra.mxu0 0
        %1429 = vmatprep.subr.bf16.mxu0 0
        %1430 = vmatpush1.bf16.xpose.msra.mxu0 0
        %1431 = vmatprep.subr.bf16.mxu0 0
        %1432 = vmatpush1.bf16.xpose.msra.mxu0 0
        %1433 = vmatprep.mubr.bf16.mxu0 %v1369
        %1434 = vmatmul.mubr.bf16.gmra.mrb[0].mxu0 %v1368
        %v1435 = vpop.f32.mrb[0].mxu0
        %v1436 = vadd.f32 %v1379, %v1435
        %v1437 = vpop.f32.mrb[0].mxu0
        %v1438 = vpop.f32.mrb[0].mxu0
        %v1439 = vpop.f32.mrb[0].mxu0
        %1440 = vdwg.mxu0
        %1441 = vst.msk [vmem:[%s241] sm:$0xff] %vm316, %v1436
        %s1442 = sand.u32 %s119, 1
        %s1443 = scalar_lea.sflag [#allocation5], %s1442
        %s1444 = sand.u32 %s119, 1
        %s1445 = smul.addr %s1444, 8
        %s1446 = scalar_lea.vmem [#allocation9], %s1445
        // Predicated region
        $region49: #{tpu_custom_call.1} parent=35 // pred_check
          %p1447 = pneg %p129
        $region50: #{tpu_custom_call.1} parent=35 // pred_check_branch
          %1449 = sbr.rel (%p1447) target = $region52
        $region51: #{tpu_custom_call.1} parent=35 // pred_region
          %s1451 = ssub.s32 128, 128
          %1452 = vsyncadd %s1443, %s1451
          %s1453 = smul.addr %s22, 128
          %s1454 = scalar_lea.hbm %s4, %s1453
          %s1456 = sshll.u32 %s1446, 4
          %s1457 = int_to_ptr.vmem [resolvable:$true] %s1456
          %1459 = dma.vmem_to_hbm [thread:$0]  %s1457, 128, %s1454, %s1443
        $region52: #{tpu_custom_call.1} parent=35 // pred_fallthru
          _
      $region36: #{tpu_custom_call.1} parent=5 // pred_fallthru
        _
      %p1460 = scmp.le.s32.totalorder 2, %s17
      // Predicated region
      $region53: #{tpu_custom_call.1} parent=5 // pred_check
        %p1461 = pneg %p1460
      $region54: #{tpu_custom_call.1} parent=5 // pred_check_branch
        %1463 = sbr.rel (%p1461) target = $region56
      $region55: #{tpu_custom_call.1} parent=5 // pred_region
        %s1464 = ssub.s32 %s17, 2
        // Predicated region
        $region57: #{tpu_custom_call.1} parent=55 // pred_check
          %p1465 = pneg %p135
        $region58: #{tpu_custom_call.1} parent=55 // pred_check_branch
          %1467 = sbr.rel (%p1465) target = $region60
        $region59: #{tpu_custom_call.1} parent=55 // pred_region
          %s1468 = sand.u32 %s120, 1
          %s1469 = scalar_lea.sflag [#allocation5], %s1468
          %s1470 = sand.u32 %s120, 1
          %s1471 = smul.addr %s1470, 8
          %s1472 = scalar_lea.vmem [#allocation9], %s1471
          %1473 = dma.done %s1469, 128
        $region60: #{tpu_custom_call.1} parent=55 // pred_fallthru
          _
      $region56: #{tpu_custom_call.1} parent=5 // pred_fallthru
        _
    $region6: #{tpu_custom_call.1} parent=1 // loop_footer
      %s21 = sadd.s32 1, %s17
    $region7: #{tpu_custom_call.1} parent=1 // loop_footer_branch
      %16 = sbr.rel target = $region3
    $region8: #{tpu_custom_call.1} parent=1 // loop_exit
      _
    %1474 = vsyncpa [#allocation4], 1
    %s1475 = scalar_lea.sflag [#allocation4], 1
    %1476 = vsyncpa %s1475, 1
    %1477 = vsyncpa [#allocation7], 1
    %1478 = vsyncpa [#allocation5], 1
    %s1479 = scalar_lea.sflag [#allocation5], 1
    %1480 = vsyncpa %s1479, 1

</llo_original>
